<compile_context>
chip_gen: v5e
topology: v5e:2x2
jax: 0.10.0
libtpu: 0.0.40
codegen_flags: <defaults>
</compile_context>

<pallas_src>
import functools
import math

import jax
import jax.numpy as jnp
from jax.experimental import pallas as pl
from jax.experimental.pallas import tpu as pltpu


# ---------------------------------------------------------------------------
# Fused kernel: embedding (layer 0 only) + all encoder layers, grid over layers.
# ---------------------------------------------------------------------------
def encoder_kernel(src_ref, mask_ref, tok_ref, pos_ref,
                   wqkv_ref, bqkv_ref, wo_ref,
                   w1_ref, b1_ref, w2_ref, vecs_ref,
                   out_ref, *, n_heads, mxu_dtype):
    l = pl.program_id(0)

    # ---- layer 0 prologue: token + positional embedding ---------------------
    @pl.when(l == 0)
    def _embed():
        src = src_ref[...]                                   # [B, S] int32 ids
        b_, s_ = src.shape
        v_, h_ = tok_ref.shape
        # One-hot MXU gather: fine for a small, fully VMEM-resident vocab.
        # TODO(synk): for a realistic vocab use a scalar-prefetch / DMA row
        # gather from HBM instead of the O(B*S*V*H) one-hot product.
        iota_v = jax.lax.broadcasted_iota(jnp.int32, (b_, s_, v_), 2)
        onehot = (src[:, :, None] == iota_v).astype(jnp.float32)
        emb = jnp.dot(onehot.reshape(b_ * s_, v_), tok_ref[...],
                      preferred_element_type=jnp.float32).reshape(b_, s_, h_)
        # TODO(synk): dropout (embedding / attention / FFN) = identity (eval).
        out_ref[...] = emb * jnp.float32(math.sqrt(h_)) + pos_ref[...][None, :, :]

    # Residual stream is resident in the output buffer (constant block index).
    x = out_ref[...]                                         # [B, S, H] f32
    B, S, H = x.shape
    N = B * S
    nh = n_heads
    hd = H // nh
    x2 = x.reshape(N, H)

    def mm(a, w):                                            # MXU: low-prec in, f32 acc
        return jnp.dot(a.astype(mxu_dtype), w.astype(mxu_dtype),
                       preferred_element_type=jnp.float32)

    vec = vecs_ref[0]                                        # [6, H] f32
    bo, ln1g, ln1b, b2, ln2g, ln2b = [vec[i] for i in range(6)]

    # ---- fused QKV projection (1/sqrt(hd) already folded into Q columns) ----
    qkv = mm(x2, wqkv_ref[0]) + bqkv_ref[0]                  # [N, 3H] f32

    key_mask = (mask_ref[...] > 0.0)[:, None, :]             # [B, 1, S]
    wo = wo_ref[0]                                           # [H, H]
    neg_big = jnp.float32(-1e10)

    # ---- multi-head self-attention (static unroll over heads) ---------------
    attn_out = jnp.zeros((N, H), jnp.float32)
    for h in range(nh):
        lo = h * hd
        qh = qkv[:, lo:lo + hd].reshape(B, S, hd)
        kh = qkv[:, H + lo:H + lo + hd].reshape(B, S, hd)
        vh = qkv[:, 2 * H + lo:2 * H + lo + hd].reshape(B, S, hd)
        e = jnp.einsum('bqd,bkd->bqk', qh.astype(mxu_dtype), kh.astype(mxu_dtype),
                       preferred_element_type=jnp.float32)
        e = jnp.where(key_mask, e, neg_big)
        e = e - jnp.max(e, axis=-1, keepdims=True)
        p = jnp.exp(e)
        p = p * pl.reciprocal(jnp.sum(p, axis=-1, keepdims=True), approx=True)
        ctx = jnp.einsum('bqk,bkd->bqd', p.astype(mxu_dtype), vh.astype(mxu_dtype),
                         preferred_element_type=jnp.float32)
        # Per-head output projection (avoids a lane-axis concat of ctx heads).
        attn_out = attn_out + mm(ctx.reshape(N, hd), wo[lo:lo + hd, :])
    attn_out = attn_out + bo

    def layer_norm(z, g, b):
        mu = jnp.mean(z, axis=-1, keepdims=True)
        var = jnp.mean(jnp.square(z - mu), axis=-1, keepdims=True)
        return (z - mu) * jax.lax.rsqrt(var + jnp.float32(1e-5)) * g + b

    x1 = layer_norm(x2 + attn_out, ln1g, ln1b)               # [N, H]

    # ---- position-wise feed-forward -----------------------------------------
    hid = jax.nn.relu(mm(x1, w1_ref[0]) + b1_ref[0])         # [N, PF]
    ffn = mm(hid, w2_ref[0]) + b2                            # [N, H]
    y = layer_norm(x1 + ffn, ln2g, ln2b)

    out_ref[...] = y.reshape(B, S, H)


def encoder_forward(src, mask2d, params, n_heads, *,
                    mxu_dtype=jnp.bfloat16,
                    vmem_limit_bytes=32 * 1024 * 1024):
    B, S = src.shape
    tok = params['tok_emb']
    V, H = tok.shape
    pos = params['pos_emb'][:S]
    L = params['wq'].shape[0]
    PF = params['w1'].shape[-1]
    hd = H // n_heads
    inv_scale = 1.0 / math.sqrt(hd)

    # Pad vocab rows to a sublane multiple (extra rows are never selected).
    v_pad = ((V + 7) // 8) * 8
    tok_p = jnp.zeros((v_pad, H), jnp.float32).at[:V].set(tok)

    # Pack per-layer weights once: fused QKV (attention scale folded into the
    # Q columns), small H-wide vectors stacked, MXU weights pre-cast.
    wqkv = jnp.concatenate(
        [params['wq'] * inv_scale, params['wk'], params['wv']], axis=-1
    ).astype(mxu_dtype)                                           # [L, H, 3H]
    bqkv = jnp.concatenate(
        [params['bq'] * inv_scale, params['bk'], params['bv']], axis=-1)  # [L,1,3H]
    vecs = jnp.concatenate(
        [params['bo'], params['ln1g'], params['ln1b'],
         params['b2'], params['ln2g'], params['ln2b']], axis=1)   # [L, 6, H]
    wo = params['wo'].astype(mxu_dtype)
    w1 = params['w1'].astype(mxu_dtype)
    w2 = params['w2'].astype(mxu_dtype)

    def const_spec(shape):
        nd = len(shape)
        return pl.BlockSpec(shape, lambda l, _n=nd: (0,) * _n)

    def layer_spec(*dims):
        nd = len(dims)
        return pl.BlockSpec((1,) + dims, lambda l, _n=nd: (l,) + (0,) * _n)

    in_specs = [
        const_spec((B, S)),           # src ids (int32), resident across layers
        const_spec((B, S)),           # key mask
        const_spec((v_pad, H)),       # token embedding table
        const_spec((S, H)),           # positional embedding rows
        layer_spec(H, 3 * H),         # fused Wqkv
        layer_spec(1, 3 * H),         # fused bqkv
        layer_spec(H, H),             # Wo
        layer_spec(H, PF),            # W1
        layer_spec(1, PF),            # b1
        layer_spec(PF, H),            # W2
        layer_spec(6, H),             # packed [bo, ln1g, ln1b, b2, ln2g, ln2b]
    ]
    # Residual stream carried in the output block itself (constant index map).
    out_spec = const_spec((B, S, H))

    # TODO(synk): on v7x (2 TensorCores) add a leading batch-parallel grid axis
    # (grid=(B, L), dimension_semantics=("parallel", "arbitrary")) with
    # per-batch src/mask/out blocks; on single-TC v5e/v6e it only adds per-step
    # overhead, so the single layer axis is kept here.
    # TODO(synk): with H=32 the output stores are lane-masked; a lane-dense
    # (B, S*H) carry layout would help at larger scale.
    kernel = functools.partial(encoder_kernel, n_heads=n_heads, mxu_dtype=mxu_dtype)
    return pl.pallas_call(
        kernel,
        out_shape=jax.ShapeDtypeStruct((B, S, H), jnp.float32),
        grid_spec=pltpu.PrefetchScalarGridSpec(
            num_scalar_prefetch=0,
            grid=(L,),
            in_specs=in_specs,
            out_specs=out_spec,
        ),
        compiler_params=pltpu.CompilerParams(
            dimension_semantics=("arbitrary",),
            vmem_limit_bytes=vmem_limit_bytes),
    )(src, mask2d, tok_p, pos, wqkv, bqkv, wo, w1, params['b1'], w2, vecs)


# ---------------------------------------------------------------------------
# Pure-JAX reference (transliteration of the torch forward, eval mode, f32).
# ---------------------------------------------------------------------------
def ref_encoder_forward(src, src_mask_4d, p, n_heads):
    tok, pos_tab = p['tok_emb'], p['pos_emb']
    B, S = src.shape
    H = tok.shape[1]
    L = p['wq'].shape[0]
    hd = H // n_heads

    def ln(z, g, b):
        mu = jnp.mean(z, axis=-1, keepdims=True)
        var = jnp.mean(jnp.square(z - mu), axis=-1, keepdims=True)
        return (z - mu) * jax.lax.rsqrt(var + 1e-5) * g + b

    def lin(z, w, b):
        return jnp.einsum('bsi,io->bso', z, w) + b

    x = tok[src] * jnp.sqrt(jnp.float32(H)) + pos_tab[:S][None, :, :]
    for l in range(L):
        q = lin(x, p['wq'][l], p['bq'][l])
        k = lin(x, p['wk'][l], p['bk'][l])
        v = lin(x, p['wv'][l], p['bv'][l])
        qh = q.reshape(B, S, n_heads, hd).transpose(0, 2, 1, 3)
        kh = k.reshape(B, S, n_heads, hd).transpose(0, 2, 1, 3)
        vh = v.reshape(B, S, n_heads, hd).transpose(0, 2, 1, 3)
        energy = jnp.einsum('bhqd,bhkd->bhqk', qh, kh) / jnp.sqrt(jnp.float32(hd))
        energy = jnp.where(src_mask_4d == 0, -1e10, energy)
        attn = jax.nn.softmax(energy, axis=-1)
        ctx = jnp.einsum('bhqk,bhkd->bhqd', attn, vh)
        ctx = ctx.transpose(0, 2, 1, 3).reshape(B, S, H)
        attn_out = lin(ctx, p['wo'][l], p['bo'][l])
        x = ln(x + attn_out, p['ln1g'][l], p['ln1b'][l])
        ff = jax.nn.relu(lin(x, p['w1'][l], p['b1'][l]))
        ff = lin(ff, p['w2'][l], p['b2'][l])
        x = ln(x + ff, p['ln2g'][l], p['ln2b'][l])
    return x


def init_params(key, vocab, max_len, H, PF, L):
    ks = jax.random.split(key, 18)
    n = lambda k, s, sc=0.1: sc * jax.random.normal(k, s, jnp.float32)
    return dict(
        tok_emb=0.5 * jax.random.normal(ks[0], (vocab, H), jnp.float32),
        pos_emb=0.5 * jax.random.normal(ks[1], (max_len, H), jnp.float32),
        wq=n(ks[2], (L, H, H)), bq=n(ks[3], (L, 1, H)),
        wk=n(ks[4], (L, H, H)), bk=n(ks[5], (L, 1, H)),
        wv=n(ks[6], (L, H, H)), bv=n(ks[7], (L, 1, H)),
        wo=n(ks[8], (L, H, H)), bo=n(ks[9], (L, 1, H)),
        ln1g=1.0 + n(ks[10], (L, 1, H)), ln1b=n(ks[11], (L, 1, H)),
        w1=n(ks[12], (L, H, PF)), b1=n(ks[13], (L, 1, PF)),
        w2=n(ks[14], (L, PF, H)), b2=n(ks[15], (L, 1, H)),
        ln2g=1.0 + n(ks[16], (L, 1, H)), ln2b=n(ks[17], (L, 1, H)),
    )


if __name__ == "__main__":
    B, S = 2, 8                       # batch, sequence length (<= max_length)
    H, n_heads, PF, L = 32, 4, 64, 2  # hid_dim, heads, pf_dim, n_layers
    V, MAXLEN = 50, 20                # vocab (input_dim), max_length

    key = jax.random.PRNGKey(0)
    k_src, k_par = jax.random.split(key)

    src = jax.random.randint(k_src, (B, S), 0, V, dtype=jnp.int32)
    mask2d = jnp.ones((B, S), jnp.float32).at[1, S - 2:].set(0.0)  # pad last 2 keys of row 1
    src_mask_4d = mask2d[:, None, None, :]                         # [B,1,1,S] like torch

    params = init_params(k_par, V, MAXLEN, H, PF, L)

    out = encoder_forward(src, mask2d, params, n_heads)
    out = jax.block_until_ready(out)

    with jax.default_matmul_precision("float32"):
        expected = ref_encoder_forward(src, src_mask_4d, params, n_heads)
    expected = jax.block_until_ready(expected)

    assert out.shape == (B, S, H)
    max_err = float(jnp.max(jnp.abs(out - expected)))
    # bf16 MXU operands (f32 accumulate) + approx reciprocal => looser tolerance
    # than the pure-f32 reference.
    assert jnp.allclose(out, expected, atol=1e-1, rtol=1e-1), f"mismatch, max err {max_err}"
    print("KERNEL_OK")
</pallas_src>

<mosaic_0001>
module attributes {stable_mosaic.version = 11 : i64} {
  func.func @encoder_kernel(%arg0: i32, %arg1: memref<2x8xi32, #tpu.memory_space<vmem>>, %arg2: memref<2x8xf32, #tpu.memory_space<vmem>>, %arg3: memref<56x32xf32, #tpu.memory_space<vmem>>, %arg4: memref<8x32xf32, #tpu.memory_space<vmem>>, %arg5: memref<1x32x96xbf16, #tpu.memory_space<vmem>>, %arg6: memref<1x1x96xf32, #tpu.memory_space<vmem>>, %arg7: memref<1x32x32xbf16, #tpu.memory_space<vmem>>, %arg8: memref<1x32x64xbf16, #tpu.memory_space<vmem>>, %arg9: memref<1x1x64xf32, #tpu.memory_space<vmem>>, %arg10: memref<1x64x32xbf16, #tpu.memory_space<vmem>>, %arg11: memref<1x6x32xf32, #tpu.memory_space<vmem>>, %arg12: memref<2x8x32xf32, #tpu.memory_space<vmem>>) attributes {dimension_semantics = [#tpu.dimension_semantics<arbitrary>], iteration_bounds = array<i64: 2>, scalar_prefetch = 0 : i64, scratch_operands = 0 : i64, tpu.core_type = #tpu.core_type<tc>, window_params = [{pipeline_mode = #tpu.pipeline_mode<synchronous>, transform_indices = @transform_0, window_bounds = array<i64: 2, 8>}, {pipeline_mode = #tpu.pipeline_mode<synchronous>, transform_indices = @transform_1, window_bounds = array<i64: 2, 8>}, {pipeline_mode = #tpu.pipeline_mode<synchronous>, transform_indices = @transform_2, window_bounds = array<i64: 56, 32>}, {pipeline_mode = #tpu.pipeline_mode<synchronous>, transform_indices = @transform_3, window_bounds = array<i64: 8, 32>}, {transform_indices = @transform_4, window_bounds = array<i64: 1, 32, 96>}, {transform_indices = @transform_5, window_bounds = array<i64: 1, 1, 96>}, {transform_indices = @transform_6, window_bounds = array<i64: 1, 32, 32>}, {transform_indices = @transform_7, window_bounds = array<i64: 1, 32, 64>}, {transform_indices = @transform_8, window_bounds = array<i64: 1, 1, 64>}, {transform_indices = @transform_9, window_bounds = array<i64: 1, 64, 32>}, {transform_indices = @transform_10, window_bounds = array<i64: 1, 6, 32>}, {pipeline_mode = #tpu.pipeline_mode<synchronous>, transform_indices = @transform_11, window_bounds = array<i64: 2, 8, 32>}]} {
    %c0_i32 = arith.constant 0 : i32
    %0 = arith.cmpi eq, %arg0, %c0_i32 : i32
    %1 = arith.extui %0 : i1 to i32
    %c0_i32_0 = arith.constant 0 : i32
    %2 = arith.cmpi ne, %1, %c0_i32_0 : i32
    scf.if %2 {
      %c0_68 = arith.constant 0 : index
      %c0_69 = arith.constant 0 : index
      %230 = vector.load %arg1[%c0_68, %c0_69] : memref<2x8xi32, #tpu.memory_space<vmem>>, vector<2x8xi32>
      %231 = tpu.iota {dimensions = array<i32: 2>} : vector<2x8x56xi32>
      %232 = vector.shape_cast %230 : vector<2x8xi32> to vector<2x8x1xi32>
      %233 = vector.broadcast %232 : vector<2x8x1xi32> to vector<2x8x56xi32>
      %234 = arith.cmpi eq, %233, %231 : vector<2x8x56xi32>
      %235 = arith.extui %234 : vector<2x8x56xi1> to vector<2x8x56xi32>
      %236 = arith.sitofp %235 : vector<2x8x56xi32> to vector<2x8x56xf32>
      %237 = vector.shape_cast %236 : vector<2x8x56xf32> to vector<16x56xf32>
      %c0_70 = arith.constant 0 : index
      %c0_71 = arith.constant 0 : index
      %238 = vector.load %arg3[%c0_70, %c0_71] : memref<56x32xf32, #tpu.memory_space<vmem>>, vector<56x32xf32>
      %cst_72 = arith.constant dense<0.000000e+00> : vector<16x32xf32>
      %239 = tpu.matmul %237, %238, %cst_72 {dimension_numbers = #tpu.dot_dimension_numbers<[1], [0], [0], [1], [0, 0, 1, 1], [], []>} : vector<16x56xf32>, vector<56x32xf32>, vector<16x32xf32> -> vector<16x32xf32>
      %240 = vector.shape_cast %239 : vector<16x32xf32> to vector<2x8x32xf32>
      %cst_73 = arith.constant 5.65685415 : f32
      %241 = vector.broadcast %cst_73 : f32 to vector<2x8x32xf32>
      %242 = arith.mulf %240, %241 : vector<2x8x32xf32>
      %c0_74 = arith.constant 0 : index
      %c0_75 = arith.constant 0 : index
      %243 = vector.load %arg4[%c0_74, %c0_75] : memref<8x32xf32, #tpu.memory_space<vmem>>, vector<8x32xf32>
      %244 = vector.shape_cast %243 : vector<8x32xf32> to vector<1x8x32xf32>
      %245 = vector.broadcast %244 : vector<1x8x32xf32> to vector<2x8x32xf32>
      %246 = arith.addf %242, %245 : vector<2x8x32xf32>
      %c0_76 = arith.constant 0 : index
      %c0_77 = arith.constant 0 : index
      %c0_78 = arith.constant 0 : index
      %247 = vector.load %arg12[%c0_76, %c0_77, %c0_78] : memref<2x8x32xf32, #tpu.memory_space<vmem>>, vector<2x8x32xf32>
      tpu.vector_store %arg12[%c0_76, %c0_77, %c0_78], %246 {strides = array<i32>} : memref<2x8x32xf32, #tpu.memory_space<vmem>>, vector<2x8x32xf32>,
    } else {
    }
    %c0 = arith.constant 0 : index
    %c0_1 = arith.constant 0 : index
    %c0_2 = arith.constant 0 : index
    %3 = vector.load %arg12[%c0, %c0_1, %c0_2] : memref<2x8x32xf32, #tpu.memory_space<vmem>>, vector<2x8x32xf32>
    %4 = vector.shape_cast %3 : vector<2x8x32xf32> to vector<16x32xf32>
    %c0_3 = arith.constant 0 : index
    %c0_4 = arith.constant 0 : index
    %c0_5 = arith.constant 0 : index
    %5 = vector.load %arg11[%c0_3, %c0_4, %c0_5] : memref<1x6x32xf32, #tpu.memory_space<vmem>>, vector<1x6x32xf32>
    %6 = vector.shape_cast %5 : vector<1x6x32xf32> to vector<6x32xf32>
    %7 = vector.extract_strided_slice %6 {offsets = [0, 0], sizes = [1, 32], strides = [1, 1]} : vector<6x32xf32> to vector<1x32xf32>
    %8 = vector.shape_cast %7 : vector<1x32xf32> to vector<32xf32>
    %9 = vector.extract_strided_slice %6 {offsets = [1, 0], sizes = [1, 32], strides = [1, 1]} : vector<6x32xf32> to vector<1x32xf32>
    %10 = vector.shape_cast %9 : vector<1x32xf32> to vector<32xf32>
    %11 = vector.extract_strided_slice %6 {offsets = [2, 0], sizes = [1, 32], strides = [1, 1]} : vector<6x32xf32> to vector<1x32xf32>
    %12 = vector.shape_cast %11 : vector<1x32xf32> to vector<32xf32>
    %13 = vector.extract_strided_slice %6 {offsets = [3, 0], sizes = [1, 32], strides = [1, 1]} : vector<6x32xf32> to vector<1x32xf32>
    %14 = vector.shape_cast %13 : vector<1x32xf32> to vector<32xf32>
    %15 = vector.extract_strided_slice %6 {offsets = [4, 0], sizes = [1, 32], strides = [1, 1]} : vector<6x32xf32> to vector<1x32xf32>
    %16 = vector.shape_cast %15 : vector<1x32xf32> to vector<32xf32>
    %17 = vector.extract_strided_slice %6 {offsets = [5, 0], sizes = [1, 32], strides = [1, 1]} : vector<6x32xf32> to vector<1x32xf32>
    %18 = vector.shape_cast %17 : vector<1x32xf32> to vector<32xf32>
    %c0_6 = arith.constant 0 : index
    %c0_7 = arith.constant 0 : index
    %c0_8 = arith.constant 0 : index
    %19 = vector.load %arg5[%c0_6, %c0_7, %c0_8] : memref<1x32x96xbf16, #tpu.memory_space<vmem>>, vector<1x32x96xbf16>
    %20 = vector.shape_cast %19 : vector<1x32x96xbf16> to vector<32x96xbf16>
    %21 = arith.truncf %4 : vector<16x32xf32> to vector<16x32xbf16>
    %cst = arith.constant dense<0.000000e+00> : vector<16x96xf32>
    %22 = tpu.matmul %21, %20, %cst {dimension_numbers = #tpu.dot_dimension_numbers<[1], [0], [0], [1], [0, 0, 1, 1], [], []>} : vector<16x32xbf16>, vector<32x96xbf16>, vector<16x96xf32> -> vector<16x96xf32>
    %c0_9 = arith.constant 0 : index
    %c0_10 = arith.constant 0 : index
    %c0_11 = arith.constant 0 : index
    %23 = vector.load %arg6[%c0_9, %c0_10, %c0_11] : memref<1x1x96xf32, #tpu.memory_space<vmem>>, vector<1x1x96xf32>
    %24 = vector.shape_cast %23 : vector<1x1x96xf32> to vector<1x96xf32>
    %25 = vector.broadcast %24 : vector<1x96xf32> to vector<16x96xf32>
    %26 = arith.addf %22, %25 : vector<16x96xf32>
    %c0_12 = arith.constant 0 : index
    %c0_13 = arith.constant 0 : index
    %27 = vector.load %arg2[%c0_12, %c0_13] : memref<2x8xf32, #tpu.memory_space<vmem>>, vector<2x8xf32>
    %cst_14 = arith.constant 0.000000e+00 : f32
    %28 = vector.broadcast %cst_14 : f32 to vector<2x8xf32>
    %29 = arith.cmpf ogt, %27, %28 : vector<2x8xf32>
    %30 = vector.shape_cast %29 : vector<2x8xi1> to vector<2x1x8xi1>
    %c0_15 = arith.constant 0 : index
    %c0_16 = arith.constant 0 : index
    %c0_17 = arith.constant 0 : index
    %31 = vector.load %arg7[%c0_15, %c0_16, %c0_17] : memref<1x32x32xbf16, #tpu.memory_space<vmem>>, vector<1x32x32xbf16>
    %32 = vector.shape_cast %31 : vector<1x32x32xbf16> to vector<32x32xbf16>
    %cst_18 = arith.constant 0.000000e+00 : f32
    %33 = vector.broadcast %cst_18 : f32 to vector<16x32xf32>
    %34 = vector.extract_strided_slice %26 {offsets = [0, 0], sizes = [16, 8], strides = [1, 1]} : vector<16x96xf32> to vector<16x8xf32>
    %35 = vector.shape_cast %34 : vector<16x8xf32> to vector<2x8x8xf32>
    %36 = vector.extract_strided_slice %26 {offsets = [0, 32], sizes = [16, 8], strides = [1, 1]} : vector<16x96xf32> to vector<16x8xf32>
    %37 = vector.shape_cast %36 : vector<16x8xf32> to vector<2x8x8xf32>
    %38 = vector.extract_strided_slice %26 {offsets = [0, 64], sizes = [16, 8], strides = [1, 1]} : vector<16x96xf32> to vector<16x8xf32>
    %39 = vector.shape_cast %38 : vector<16x8xf32> to vector<2x8x8xf32>
    %40 = arith.truncf %35 : vector<2x8x8xf32> to vector<2x8x8xbf16>
    %41 = arith.truncf %37 : vector<2x8x8xf32> to vector<2x8x8xbf16>
    "tpu.trace_start"() <{level = 10 : i32, message = "bqd,bkd->bqk"}> : () -> ()
    %cst_19 = arith.constant dense<0.000000e+00> : vector<2x8x8xf32>
    %42 = tpu.matmul %40, %41, %cst_19 {dimension_numbers = #tpu.dot_dimension_numbers<[2], [2], [1], [1], [0, 0, 0, 1, 1, 1], [0], [0]>} : vector<2x8x8xbf16>, vector<2x8x8xbf16>, vector<2x8x8xf32> -> vector<2x8x8xf32>
    %cst_20 = arith.constant -1.000000e+10 : f32
    "tpu.trace_stop"() : () -> ()
    %43 = vector.shape_cast %30 : vector<2x1x8xi1> to vector<2x1x8xi1>
    %44 = vector.broadcast %43 : vector<2x1x8xi1> to vector<2x8x8xi1>
    %45 = vector.broadcast %cst_20 : f32 to vector<2x8x8xf32>
    %46 = arith.select %44, %42, %45 : vector<2x8x8xi1>, vector<2x8x8xf32>
    %cst_21 = arith.constant dense<0xFF800000> : vector<2x8xf32>
    %47 = vector.multi_reduction <maximumf>, %46, %cst_21 [2] : vector<2x8x8xf32> to vector<2x8xf32>
    %48 = vector.shape_cast %47 : vector<2x8xf32> to vector<2x8x1xf32>
    %49 = vector.broadcast %48 : vector<2x8x1xf32> to vector<2x8x8xf32>
    %50 = arith.subf %46, %49 : vector<2x8x8xf32>
    %51 = math.exp %50 : vector<2x8x8xf32>
    %cst_22 = arith.constant dense<0.000000e+00> : vector<2x8xf32>
    %52 = vector.multi_reduction <add>, %51, %cst_22 [2] : vector<2x8x8xf32> to vector<2x8xf32>
    %53 = vector.shape_cast %52 : vector<2x8xf32> to vector<2x8x1xf32>
    %54 = tpu.reciprocal %53 {approx = true} : vector<2x8x1xf32> -> vector<2x8x1xf32>
    %55 = vector.broadcast %54 : vector<2x8x1xf32> to vector<2x8x8xf32>
    %56 = arith.mulf %51, %55 : vector<2x8x8xf32>
    %57 = arith.truncf %56 : vector<2x8x8xf32> to vector<2x8x8xbf16>
    %58 = arith.truncf %39 : vector<2x8x8xf32> to vector<2x8x8xbf16>
    "tpu.trace_start"() <{level = 10 : i32, message = "bqk,bkd->bqd"}> : () -> ()
    %cst_23 = arith.constant dense<0.000000e+00> : vector<2x8x8xf32>
    %59 = tpu.matmul %57, %58, %cst_23 {dimension_numbers = #tpu.dot_dimension_numbers<[2], [1], [1], [2], [0, 0, 0, 1, 1, 2], [0], [0]>} : vector<2x8x8xbf16>, vector<2x8x8xbf16>, vector<2x8x8xf32> -> vector<2x8x8xf32>
    "tpu.trace_stop"() : () -> ()
    %60 = vector.shape_cast %59 : vector<2x8x8xf32> to vector<16x8xf32>
    %61 = vector.extract_strided_slice %32 {offsets = [0, 0], sizes = [8, 32], strides = [1, 1]} : vector<32x32xbf16> to vector<8x32xbf16>
    %62 = arith.truncf %60 : vector<16x8xf32> to vector<16x8xbf16>
    %cst_24 = arith.constant dense<0.000000e+00> : vector<16x32xf32>
    %63 = tpu.matmul %62, %61, %cst_24 {dimension_numbers = #tpu.dot_dimension_numbers<[1], [0], [0], [1], [0, 0, 1, 1], [], []>} : vector<16x8xbf16>, vector<8x32xbf16>, vector<16x32xf32> -> vector<16x32xf32>
    %64 = arith.addf %33, %63 : vector<16x32xf32>
    %65 = vector.extract_strided_slice %26 {offsets = [0, 8], sizes = [16, 8], strides = [1, 1]} : vector<16x96xf32> to vector<16x8xf32>
    %66 = vector.shape_cast %65 : vector<16x8xf32> to vector<2x8x8xf32>
    %67 = vector.extract_strided_slice %26 {offsets = [0, 40], sizes = [16, 8], strides = [1, 1]} : vector<16x96xf32> to vector<16x8xf32>
    %68 = vector.shape_cast %67 : vector<16x8xf32> to vector<2x8x8xf32>
    %69 = vector.extract_strided_slice %26 {offsets = [0, 72], sizes = [16, 8], strides = [1, 1]} : vector<16x96xf32> to vector<16x8xf32>
    %70 = vector.shape_cast %69 : vector<16x8xf32> to vector<2x8x8xf32>
    %71 = arith.truncf %66 : vector<2x8x8xf32> to vector<2x8x8xbf16>
    %72 = arith.truncf %68 : vector<2x8x8xf32> to vector<2x8x8xbf16>
    "tpu.trace_start"() <{level = 10 : i32, message = "bqd,bkd->bqk"}> : () -> ()
    %cst_25 = arith.constant dense<0.000000e+00> : vector<2x8x8xf32>
    %73 = tpu.matmul %71, %72, %cst_25 {dimension_numbers = #tpu.dot_dimension_numbers<[2], [2], [1], [1], [0, 0, 0, 1, 1, 1], [0], [0]>} : vector<2x8x8xbf16>, vector<2x8x8xbf16>, vector<2x8x8xf32> -> vector<2x8x8xf32>
    %cst_26 = arith.constant -1.000000e+10 : f32
    "tpu.trace_stop"() : () -> ()
    %74 = vector.shape_cast %30 : vector<2x1x8xi1> to vector<2x1x8xi1>
    %75 = vector.broadcast %74 : vector<2x1x8xi1> to vector<2x8x8xi1>
    %76 = vector.broadcast %cst_26 : f32 to vector<2x8x8xf32>
    %77 = arith.select %75, %73, %76 : vector<2x8x8xi1>, vector<2x8x8xf32>
    %cst_27 = arith.constant dense<0xFF800000> : vector<2x8xf32>
    %78 = vector.multi_reduction <maximumf>, %77, %cst_27 [2] : vector<2x8x8xf32> to vector<2x8xf32>
    %79 = vector.shape_cast %78 : vector<2x8xf32> to vector<2x8x1xf32>
    %80 = vector.broadcast %79 : vector<2x8x1xf32> to vector<2x8x8xf32>
    %81 = arith.subf %77, %80 : vector<2x8x8xf32>
    %82 = math.exp %81 : vector<2x8x8xf32>
    %cst_28 = arith.constant dense<0.000000e+00> : vector<2x8xf32>
    %83 = vector.multi_reduction <add>, %82, %cst_28 [2] : vector<2x8x8xf32> to vector<2x8xf32>
    %84 = vector.shape_cast %83 : vector<2x8xf32> to vector<2x8x1xf32>
    %85 = tpu.reciprocal %84 {approx = true} : vector<2x8x1xf32> -> vector<2x8x1xf32>
    %86 = vector.broadcast %85 : vector<2x8x1xf32> to vector<2x8x8xf32>
    %87 = arith.mulf %82, %86 : vector<2x8x8xf32>
    %88 = arith.truncf %87 : vector<2x8x8xf32> to vector<2x8x8xbf16>
    %89 = arith.truncf %70 : vector<2x8x8xf32> to vector<2x8x8xbf16>
    "tpu.trace_start"() <{level = 10 : i32, message = "bqk,bkd->bqd"}> : () -> ()
    %cst_29 = arith.constant dense<0.000000e+00> : vector<2x8x8xf32>
    %90 = tpu.matmul %88, %89, %cst_29 {dimension_numbers = #tpu.dot_dimension_numbers<[2], [1], [1], [2], [0, 0, 0, 1, 1, 2], [0], [0]>} : vector<2x8x8xbf16>, vector<2x8x8xbf16>, vector<2x8x8xf32> -> vector<2x8x8xf32>
    "tpu.trace_stop"() : () -> ()
    %91 = vector.shape_cast %90 : vector<2x8x8xf32> to vector<16x8xf32>
    %92 = vector.extract_strided_slice %32 {offsets = [8, 0], sizes = [8, 32], strides = [1, 1]} : vector<32x32xbf16> to vector<8x32xbf16>
    %93 = arith.truncf %91 : vector<16x8xf32> to vector<16x8xbf16>
    %cst_30 = arith.constant dense<0.000000e+00> : vector<16x32xf32>
    %94 = tpu.matmul %93, %92, %cst_30 {dimension_numbers = #tpu.dot_dimension_numbers<[1], [0], [0], [1], [0, 0, 1, 1], [], []>} : vector<16x8xbf16>, vector<8x32xbf16>, vector<16x32xf32> -> vector<16x32xf32>
    %95 = arith.addf %64, %94 : vector<16x32xf32>
    %96 = vector.extract_strided_slice %26 {offsets = [0, 16], sizes = [16, 8], strides = [1, 1]} : vector<16x96xf32> to vector<16x8xf32>
    %97 = vector.shape_cast %96 : vector<16x8xf32> to vector<2x8x8xf32>
    %98 = vector.extract_strided_slice %26 {offsets = [0, 48], sizes = [16, 8], strides = [1, 1]} : vector<16x96xf32> to vector<16x8xf32>
    %99 = vector.shape_cast %98 : vector<16x8xf32> to vector<2x8x8xf32>
    %100 = vector.extract_strided_slice %26 {offsets = [0, 80], sizes = [16, 8], strides = [1, 1]} : vector<16x96xf32> to vector<16x8xf32>
    %101 = vector.shape_cast %100 : vector<16x8xf32> to vector<2x8x8xf32>
    %102 = arith.truncf %97 : vector<2x8x8xf32> to vector<2x8x8xbf16>
    %103 = arith.truncf %99 : vector<2x8x8xf32> to vector<2x8x8xbf16>
    "tpu.trace_start"() <{level = 10 : i32, message = "bqd,bkd->bqk"}> : () -> ()
    %cst_31 = arith.constant dense<0.000000e+00> : vector<2x8x8xf32>
    %104 = tpu.matmul %102, %103, %cst_31 {dimension_numbers = #tpu.dot_dimension_numbers<[2], [2], [1], [1], [0, 0, 0, 1, 1, 1], [0], [0]>} : vector<2x8x8xbf16>, vector<2x8x8xbf16>, vector<2x8x8xf32> -> vector<2x8x8xf32>
    %cst_32 = arith.constant -1.000000e+10 : f32
    "tpu.trace_stop"() : () -> ()
    %105 = vector.shape_cast %30 : vector<2x1x8xi1> to vector<2x1x8xi1>
    %106 = vector.broadcast %105 : vector<2x1x8xi1> to vector<2x8x8xi1>
    %107 = vector.broadcast %cst_32 : f32 to vector<2x8x8xf32>
    %108 = arith.select %106, %104, %107 : vector<2x8x8xi1>, vector<2x8x8xf32>
    %cst_33 = arith.constant dense<0xFF800000> : vector<2x8xf32>
    %109 = vector.multi_reduction <maximumf>, %108, %cst_33 [2] : vector<2x8x8xf32> to vector<2x8xf32>
    %110 = vector.shape_cast %109 : vector<2x8xf32> to vector<2x8x1xf32>
    %111 = vector.broadcast %110 : vector<2x8x1xf32> to vector<2x8x8xf32>
    %112 = arith.subf %108, %111 : vector<2x8x8xf32>
    %113 = math.exp %112 : vector<2x8x8xf32>
    %cst_34 = arith.constant dense<0.000000e+00> : vector<2x8xf32>
    %114 = vector.multi_reduction <add>, %113, %cst_34 [2] : vector<2x8x8xf32> to vector<2x8xf32>
    %115 = vector.shape_cast %114 : vector<2x8xf32> to vector<2x8x1xf32>
    %116 = tpu.reciprocal %115 {approx = true} : vector<2x8x1xf32> -> vector<2x8x1xf32>
    %117 = vector.broadcast %116 : vector<2x8x1xf32> to vector<2x8x8xf32>
    %118 = arith.mulf %113, %117 : vector<2x8x8xf32>
    %119 = arith.truncf %118 : vector<2x8x8xf32> to vector<2x8x8xbf16>
    %120 = arith.truncf %101 : vector<2x8x8xf32> to vector<2x8x8xbf16>
    "tpu.trace_start"() <{level = 10 : i32, message = "bqk,bkd->bqd"}> : () -> ()
    %cst_35 = arith.constant dense<0.000000e+00> : vector<2x8x8xf32>
    %121 = tpu.matmul %119, %120, %cst_35 {dimension_numbers = #tpu.dot_dimension_numbers<[2], [1], [1], [2], [0, 0, 0, 1, 1, 2], [0], [0]>} : vector<2x8x8xbf16>, vector<2x8x8xbf16>, vector<2x8x8xf32> -> vector<2x8x8xf32>
    "tpu.trace_stop"() : () -> ()
    %122 = vector.shape_cast %121 : vector<2x8x8xf32> to vector<16x8xf32>
    %123 = vector.extract_strided_slice %32 {offsets = [16, 0], sizes = [8, 32], strides = [1, 1]} : vector<32x32xbf16> to vector<8x32xbf16>
    %124 = arith.truncf %122 : vector<16x8xf32> to vector<16x8xbf16>
    %cst_36 = arith.constant dense<0.000000e+00> : vector<16x32xf32>
    %125 = tpu.matmul %124, %123, %cst_36 {dimension_numbers = #tpu.dot_dimension_numbers<[1], [0], [0], [1], [0, 0, 1, 1], [], []>} : vector<16x8xbf16>, vector<8x32xbf16>, vector<16x32xf32> -> vector<16x32xf32>
    %126 = arith.addf %95, %125 : vector<16x32xf32>
    %127 = vector.extract_strided_slice %26 {offsets = [0, 24], sizes = [16, 8], strides = [1, 1]} : vector<16x96xf32> to vector<16x8xf32>
    %128 = vector.shape_cast %127 : vector<16x8xf32> to vector<2x8x8xf32>
    %129 = vector.extract_strided_slice %26 {offsets = [0, 56], sizes = [16, 8], strides = [1, 1]} : vector<16x96xf32> to vector<16x8xf32>
    %130 = vector.shape_cast %129 : vector<16x8xf32> to vector<2x8x8xf32>
    %131 = vector.extract_strided_slice %26 {offsets = [0, 88], sizes = [16, 8], strides = [1, 1]} : vector<16x96xf32> to vector<16x8xf32>
    %132 = vector.shape_cast %131 : vector<16x8xf32> to vector<2x8x8xf32>
    %133 = arith.truncf %128 : vector<2x8x8xf32> to vector<2x8x8xbf16>
    %134 = arith.truncf %130 : vector<2x8x8xf32> to vector<2x8x8xbf16>
    "tpu.trace_start"() <{level = 10 : i32, message = "bqd,bkd->bqk"}> : () -> ()
    %cst_37 = arith.constant dense<0.000000e+00> : vector<2x8x8xf32>
    %135 = tpu.matmul %133, %134, %cst_37 {dimension_numbers = #tpu.dot_dimension_numbers<[2], [2], [1], [1], [0, 0, 0, 1, 1, 1], [0], [0]>} : vector<2x8x8xbf16>, vector<2x8x8xbf16>, vector<2x8x8xf32> -> vector<2x8x8xf32>
    %cst_38 = arith.constant -1.000000e+10 : f32
    "tpu.trace_stop"() : () -> ()
    %136 = vector.shape_cast %30 : vector<2x1x8xi1> to vector<2x1x8xi1>
    %137 = vector.broadcast %136 : vector<2x1x8xi1> to vector<2x8x8xi1>
    %138 = vector.broadcast %cst_38 : f32 to vector<2x8x8xf32>
    %139 = arith.select %137, %135, %138 : vector<2x8x8xi1>, vector<2x8x8xf32>
    %cst_39 = arith.constant dense<0xFF800000> : vector<2x8xf32>
    %140 = vector.multi_reduction <maximumf>, %139, %cst_39 [2] : vector<2x8x8xf32> to vector<2x8xf32>
    %141 = vector.shape_cast %140 : vector<2x8xf32> to vector<2x8x1xf32>
    %142 = vector.broadcast %141 : vector<2x8x1xf32> to vector<2x8x8xf32>
    %143 = arith.subf %139, %142 : vector<2x8x8xf32>
    %144 = math.exp %143 : vector<2x8x8xf32>
    %cst_40 = arith.constant dense<0.000000e+00> : vector<2x8xf32>
    %145 = vector.multi_reduction <add>, %144, %cst_40 [2] : vector<2x8x8xf32> to vector<2x8xf32>
    %146 = vector.shape_cast %145 : vector<2x8xf32> to vector<2x8x1xf32>
    %147 = tpu.reciprocal %146 {approx = true} : vector<2x8x1xf32> -> vector<2x8x1xf32>
    %148 = vector.broadcast %147 : vector<2x8x1xf32> to vector<2x8x8xf32>
    %149 = arith.mulf %144, %148 : vector<2x8x8xf32>
    %150 = arith.truncf %149 : vector<2x8x8xf32> to vector<2x8x8xbf16>
    %151 = arith.truncf %132 : vector<2x8x8xf32> to vector<2x8x8xbf16>
    "tpu.trace_start"() <{level = 10 : i32, message = "bqk,bkd->bqd"}> : () -> ()
    %cst_41 = arith.constant dense<0.000000e+00> : vector<2x8x8xf32>
    %152 = tpu.matmul %150, %151, %cst_41 {dimension_numbers = #tpu.dot_dimension_numbers<[2], [1], [1], [2], [0, 0, 0, 1, 1, 2], [0], [0]>} : vector<2x8x8xbf16>, vector<2x8x8xbf16>, vector<2x8x8xf32> -> vector<2x8x8xf32>
    "tpu.trace_stop"() : () -> ()
    %153 = vector.shape_cast %152 : vector<2x8x8xf32> to vector<16x8xf32>
    %154 = vector.extract_strided_slice %32 {offsets = [24, 0], sizes = [8, 32], strides = [1, 1]} : vector<32x32xbf16> to vector<8x32xbf16>
    %155 = arith.truncf %153 : vector<16x8xf32> to vector<16x8xbf16>
    %cst_42 = arith.constant dense<0.000000e+00> : vector<16x32xf32>
    %156 = tpu.matmul %155, %154, %cst_42 {dimension_numbers = #tpu.dot_dimension_numbers<[1], [0], [0], [1], [0, 0, 1, 1], [], []>} : vector<16x8xbf16>, vector<8x32xbf16>, vector<16x32xf32> -> vector<16x32xf32>
    %157 = arith.addf %126, %156 : vector<16x32xf32>
    %158 = vector.shape_cast %8 : vector<32xf32> to vector<1x32xf32>
    %159 = vector.broadcast %158 : vector<1x32xf32> to vector<16x32xf32>
    %160 = arith.addf %157, %159 : vector<16x32xf32>
    %161 = arith.addf %4, %160 : vector<16x32xf32>
    %cst_43 = arith.constant dense<0.000000e+00> : vector<16xf32>
    %162 = vector.multi_reduction <add>, %161, %cst_43 [1] : vector<16x32xf32> to vector<16xf32>
    %163 = vector.shape_cast %162 : vector<16xf32> to vector<16x1xf32>
    %cst_44 = arith.constant 3.200000e+01 : f32
    %164 = vector.broadcast %cst_44 : f32 to vector<16x1xf32>
    %165 = arith.divf %163, %164 : vector<16x1xf32>
    %166 = vector.broadcast %165 : vector<16x1xf32> to vector<16x32xf32>
    %167 = arith.subf %161, %166 : vector<16x32xf32>
    %168 = arith.mulf %167, %167 : vector<16x32xf32>
    %cst_45 = arith.constant dense<0.000000e+00> : vector<16xf32>
    %169 = vector.multi_reduction <add>, %168, %cst_45 [1] : vector<16x32xf32> to vector<16xf32>
    %170 = vector.shape_cast %169 : vector<16xf32> to vector<16x1xf32>
    %cst_46 = arith.constant 3.200000e+01 : f32
    %171 = vector.broadcast %cst_46 : f32 to vector<16x1xf32>
    %172 = arith.divf %170, %171 : vector<16x1xf32>
    %173 = vector.broadcast %165 : vector<16x1xf32> to vector<16x32xf32>
    %174 = arith.subf %161, %173 : vector<16x32xf32>
    %cst_47 = arith.constant 9.99999974E-6 : f32
    %175 = vector.broadcast %cst_47 : f32 to vector<16x1xf32>
    %176 = arith.addf %172, %175 : vector<16x1xf32>
    %177 = math.rsqrt %176 : vector<16x1xf32>
    %178 = vector.broadcast %177 : vector<16x1xf32> to vector<16x32xf32>
    %179 = arith.mulf %174, %178 : vector<16x32xf32>
    %180 = vector.shape_cast %10 : vector<32xf32> to vector<1x32xf32>
    %181 = vector.broadcast %180 : vector<1x32xf32> to vector<16x32xf32>
    %182 = arith.mulf %179, %181 : vector<16x32xf32>
    %183 = vector.shape_cast %12 : vector<32xf32> to vector<1x32xf32>
    %184 = vector.broadcast %183 : vector<1x32xf32> to vector<16x32xf32>
    %185 = arith.addf %182, %184 : vector<16x32xf32>
    %c0_48 = arith.constant 0 : index
    %c0_49 = arith.constant 0 : index
    %c0_50 = arith.constant 0 : index
    %186 = vector.load %arg8[%c0_48, %c0_49, %c0_50] : memref<1x32x64xbf16, #tpu.memory_space<vmem>>, vector<1x32x64xbf16>
    %187 = vector.shape_cast %186 : vector<1x32x64xbf16> to vector<32x64xbf16>
    %188 = arith.truncf %185 : vector<16x32xf32> to vector<16x32xbf16>
    %cst_51 = arith.constant dense<0.000000e+00> : vector<16x64xf32>
    %189 = tpu.matmul %188, %187, %cst_51 {dimension_numbers = #tpu.dot_dimension_numbers<[1], [0], [0], [1], [0, 0, 1, 1], [], []>} : vector<16x32xbf16>, vector<32x64xbf16>, vector<16x64xf32> -> vector<16x64xf32>
    %c0_52 = arith.constant 0 : index
    %c0_53 = arith.constant 0 : index
    %c0_54 = arith.constant 0 : index
    %190 = vector.load %arg9[%c0_52, %c0_53, %c0_54] : memref<1x1x64xf32, #tpu.memory_space<vmem>>, vector<1x1x64xf32>
    %191 = vector.shape_cast %190 : vector<1x1x64xf32> to vector<1x64xf32>
    %192 = vector.broadcast %191 : vector<1x64xf32> to vector<16x64xf32>
    %193 = arith.addf %189, %192 : vector<16x64xf32>
    %cst_55 = arith.constant 0.000000e+00 : f32
    %194 = vector.broadcast %cst_55 : f32 to vector<16x64xf32>
    %195 = arith.maximumf %193, %194 : vector<16x64xf32>
    %c0_56 = arith.constant 0 : index
    %c0_57 = arith.constant 0 : index
    %c0_58 = arith.constant 0 : index
    %196 = vector.load %arg10[%c0_56, %c0_57, %c0_58] : memref<1x64x32xbf16, #tpu.memory_space<vmem>>, vector<1x64x32xbf16>
    %197 = vector.shape_cast %196 : vector<1x64x32xbf16> to vector<64x32xbf16>
    %198 = arith.truncf %195 : vector<16x64xf32> to vector<16x64xbf16>
    %cst_59 = arith.constant dense<0.000000e+00> : vector<16x32xf32>
    %199 = tpu.matmul %198, %197, %cst_59 {dimension_numbers = #tpu.dot_dimension_numbers<[1], [0], [0], [1], [0, 0, 1, 1], [], []>} : vector<16x64xbf16>, vector<64x32xbf16>, vector<16x32xf32> -> vector<16x32xf32>
    %200 = vector.shape_cast %14 : vector<32xf32> to vector<1x32xf32>
    %201 = vector.broadcast %200 : vector<1x32xf32> to vector<16x32xf32>
    %202 = arith.addf %199, %201 : vector<16x32xf32>
    %203 = arith.addf %185, %202 : vector<16x32xf32>
    %cst_60 = arith.constant dense<0.000000e+00> : vector<16xf32>
    %204 = vector.multi_reduction <add>, %203, %cst_60 [1] : vector<16x32xf32> to vector<16xf32>
    %205 = vector.shape_cast %204 : vector<16xf32> to vector<16x1xf32>
    %cst_61 = arith.constant 3.200000e+01 : f32
    %206 = vector.broadcast %cst_61 : f32 to vector<16x1xf32>
    %207 = arith.divf %205, %206 : vector<16x1xf32>
    %208 = vector.broadcast %207 : vector<16x1xf32> to vector<16x32xf32>
    %209 = arith.subf %203, %208 : vector<16x32xf32>
    %210 = arith.mulf %209, %209 : vector<16x32xf32>
    %cst_62 = arith.constant dense<0.000000e+00> : vector<16xf32>
    %211 = vector.multi_reduction <add>, %210, %cst_62 [1] : vector<16x32xf32> to vector<16xf32>
    %212 = vector.shape_cast %211 : vector<16xf32> to vector<16x1xf32>
    %cst_63 = arith.constant 3.200000e+01 : f32
    %213 = vector.broadcast %cst_63 : f32 to vector<16x1xf32>
    %214 = arith.divf %212, %213 : vector<16x1xf32>
    %215 = vector.broadcast %207 : vector<16x1xf32> to vector<16x32xf32>
    %216 = arith.subf %203, %215 : vector<16x32xf32>
    %cst_64 = arith.constant 9.99999974E-6 : f32
    %217 = vector.broadcast %cst_64 : f32 to vector<16x1xf32>
    %218 = arith.addf %214, %217 : vector<16x1xf32>
    %219 = math.rsqrt %218 : vector<16x1xf32>
    %220 = vector.broadcast %219 : vector<16x1xf32> to vector<16x32xf32>
    %221 = arith.mulf %216, %220 : vector<16x32xf32>
    %222 = vector.shape_cast %16 : vector<32xf32> to vector<1x32xf32>
    %223 = vector.broadcast %222 : vector<1x32xf32> to vector<16x32xf32>
    %224 = arith.mulf %221, %223 : vector<16x32xf32>
    %225 = vector.shape_cast %18 : vector<32xf32> to vector<1x32xf32>
    %226 = vector.broadcast %225 : vector<1x32xf32> to vector<16x32xf32>
    %227 = arith.addf %224, %226 : vector<16x32xf32>
    %228 = vector.shape_cast %227 : vector<16x32xf32> to vector<2x8x32xf32>
    %c0_65 = arith.constant 0 : index
    %c0_66 = arith.constant 0 : index
    %c0_67 = arith.constant 0 : index
    %229 = vector.load %arg12[%c0_65, %c0_66, %c0_67] : memref<2x8x32xf32, #tpu.memory_space<vmem>>, vector<2x8x32xf32>
    tpu.vector_store %arg12[%c0_65, %c0_66, %c0_67], %228 {strides = array<i32>} : memref<2x8x32xf32, #tpu.memory_space<vmem>>, vector<2x8x32xf32>,
    return
  }
  func.func @transform_0(%arg0: i32) -> (i32, i32) {
    %c0_i32 = arith.constant 0 : i32
    %c0_i32_0 = arith.constant 0 : i32
    %c0_i32_1 = arith.constant 0 : i32
    return %c0_i32, %c0_i32_0 : i32, i32
  }
  func.func @transform_1(%arg0: i32) -> (i32, i32) {
    %c0_i32 = arith.constant 0 : i32
    %c0_i32_0 = arith.constant 0 : i32
    %c0_i32_1 = arith.constant 0 : i32
    return %c0_i32, %c0_i32_0 : i32, i32
  }
  func.func @transform_2(%arg0: i32) -> (i32, i32) {
    %c0_i32 = arith.constant 0 : i32
    %c0_i32_0 = arith.constant 0 : i32
    %c0_i32_1 = arith.constant 0 : i32
    return %c0_i32, %c0_i32_0 : i32, i32
  }
  func.func @transform_3(%arg0: i32) -> (i32, i32) {
    %c0_i32 = arith.constant 0 : i32
    %c0_i32_0 = arith.constant 0 : i32
    %c0_i32_1 = arith.constant 0 : i32
    return %c0_i32, %c0_i32_0 : i32, i32
  }
  func.func @transform_4(%arg0: i32) -> (i32, i32, i32) {
    %c0_i32 = arith.constant 0 : i32
    %c0_i32_0 = arith.constant 0 : i32
    %c0_i32_1 = arith.constant 0 : i32
    return %arg0, %c0_i32, %c0_i32_0 : i32, i32, i32
  }
  func.func @transform_5(%arg0: i32) -> (i32, i32, i32) {
    %c0_i32 = arith.constant 0 : i32
    %c0_i32_0 = arith.constant 0 : i32
    %c0_i32_1 = arith.constant 0 : i32
    return %arg0, %c0_i32, %c0_i32_0 : i32, i32, i32
  }
  func.func @transform_6(%arg0: i32) -> (i32, i32, i32) {
    %c0_i32 = arith.constant 0 : i32
    %c0_i32_0 = arith.constant 0 : i32
    %c0_i32_1 = arith.constant 0 : i32
    return %arg0, %c0_i32, %c0_i32_0 : i32, i32, i32
  }
  func.func @transform_7(%arg0: i32) -> (i32, i32, i32) {
    %c0_i32 = arith.constant 0 : i32
    %c0_i32_0 = arith.constant 0 : i32
    %c0_i32_1 = arith.constant 0 : i32
    return %arg0, %c0_i32, %c0_i32_0 : i32, i32, i32
  }
  func.func @transform_8(%arg0: i32) -> (i32, i32, i32) {
    %c0_i32 = arith.constant 0 : i32
    %c0_i32_0 = arith.constant 0 : i32
    %c0_i32_1 = arith.constant 0 : i32
    return %arg0, %c0_i32, %c0_i32_0 : i32, i32, i32
  }
  func.func @transform_9(%arg0: i32) -> (i32, i32, i32) {
    %c0_i32 = arith.constant 0 : i32
    %c0_i32_0 = arith.constant 0 : i32
    %c0_i32_1 = arith.constant 0 : i32
    return %arg0, %c0_i32, %c0_i32_0 : i32, i32, i32
  }
  func.func @transform_10(%arg0: i32) -> (i32, i32, i32) {
    %c0_i32 = arith.constant 0 : i32
    %c0_i32_0 = arith.constant 0 : i32
    %c0_i32_1 = arith.constant 0 : i32
    return %arg0, %c0_i32, %c0_i32_0 : i32, i32, i32
  }
  func.func @transform_11(%arg0: i32) -> (i32, i32, i32) {
    %c0_i32 = arith.constant 0 : i32
    %c0_i32_0 = arith.constant 0 : i32
    %c0_i32_1 = arith.constant 0 : i32
    %c0_i32_2 = arith.constant 0 : i32
    return %c0_i32, %c0_i32_0, %c0_i32_1 : i32, i32, i32
  }
}

</mosaic_0001>

<llo_original>
// kernel: tpu_custom_call.1
$region0: #{tpu_custom_call.1}
  #allocation0 [shape = 'u32[]', space=smem, size = 0x4, offset = 0x4, fixed_abs, tag = 'smem constant byte address 0x4 - core index']
  #allocation1 [shape = 'u32[72,128]{1,0:T(1,128)}', space=vmem, size = 0x9000, scoped, tag = 'internal scratch']
  %s0 = inlined_call_operand.vmem [shape: s32[2,8], index: 0, kind: input, shape index: {}]
  %s1 = inlined_call_operand.vmem [shape: f32[2,8], index: 1, kind: input, shape index: {}]
  %s2 = inlined_call_operand.vmem [shape: f32[56,32], index: 2, kind: input, shape index: {}]
  %s3 = inlined_call_operand.vmem [shape: f32[8,32], index: 3, kind: input, shape index: {}]
  %s4 = inlined_call_operand.vmem [shape: bf16[2,32,96], index: 4, kind: input, shape index: {}]
  %s5 = inlined_call_operand.vmem [shape: f32[2,1,96], index: 5, kind: input, shape index: {}]
  %s6 = inlined_call_operand.vmem [shape: bf16[2,32,32], index: 6, kind: input, shape index: {}]
  %s7 = inlined_call_operand.vmem [shape: bf16[2,32,64], index: 7, kind: input, shape index: {}]
  %s8 = inlined_call_operand.vmem [shape: f32[2,1,64], index: 8, kind: input, shape index: {}]
  %s9 = inlined_call_operand.vmem [shape: bf16[2,64,32], index: 9, kind: input, shape index: {}]
  %s10 = inlined_call_operand.vmem [shape: f32[2,6,32], index: 10, kind: input, shape index: {}]
  %s11 = inlined_call_operand.hbm [shape: f32[2,8,32], index: 11, kind: output, shape index: {}]
  %s12 = sld [smem:[#allocation0]]
  $region81: #{tpu_custom_call.1} parent=0
    _
  %s14 = ssub.s32 1, %s12
  %s15 = scalar_select 0, %s14, %s12
  $region1: #{tpu_custom_call.1} parent=0
    #allocation2 [shape = 'u8[8192]{0}', space=vmem, size = 0x2000, scoped, tag = 'output window, operand 0, single buffered']
    #allocation3 [shape = 's32[2]{0}', space=sflag, size = 0x8, scoped, tag = 'scoped memory for tpu_custom_call.1']
    %16 = vsyncpa [#allocation3], 0
    loop: start=0, step=1, limit=4
    $region2: #{tpu_custom_call.1} parent=1 // loop_pre_header
      _
    $region3: #{tpu_custom_call.1} parent=1 // loop_header
      %s18 = sphi 0, %s22
      %p19 = scmp.ge.s32.totalorder %s18, 4
      %s26 = sphi 0, %s26
      %s28 = sphi 0, %s26
      %s29 = sphi 0, %s28
      %s43 = sphi 0, %s29
      %s47 = sphi 0, %s47
      %s49 = sphi 0, %s47
      %s50 = sphi 0, %s49
      %s64 = sphi 0, %s50
      %s68 = sphi 0, %s68
      %s70 = sphi 0, %s68
      %s71 = sphi 0, %s70
      %s85 = sphi 0, %s71
      %s89 = sphi 0, %s89
      %s91 = sphi 0, %s89
      %s92 = sphi 0, %s91
      %s106 = sphi 0, %s92
      %s112 = sphi 0, %s114
      %s115 = sphi 0, %s112
      %s116 = sphi 0, %s115
      %s132 = sphi 0, %s116
      %s138 = sphi 0, %s140
      %s141 = sphi 0, %s138
      %s142 = sphi 0, %s141
      %s158 = sphi 0, %s142
      %s164 = sphi 0, %s166
      %s167 = sphi 0, %s164
      %s168 = sphi 0, %s167
      %s184 = sphi 0, %s168
      %s190 = sphi 0, %s192
      %s193 = sphi 0, %s190
      %s194 = sphi 0, %s193
      %s210 = sphi 0, %s194
      %s216 = sphi 0, %s218
      %s219 = sphi 0, %s216
      %s220 = sphi 0, %s219
      %s236 = sphi 0, %s220
      %s242 = sphi 0, %s244
      %s245 = sphi 0, %s242
      %s246 = sphi 0, %s245
      %s262 = sphi 0, %s246
      %s268 = sphi 0, %s270
      %s271 = sphi 0, %s268
      %s272 = sphi 0, %s271
      %s288 = sphi 0, %s272
      %s292 = sphi 0, %s292
      %s294 = sphi 0, %s292
      %s295 = sphi 0, %s294
      %s309 = sphi 0, %s295
    $region4: #{tpu_custom_call.1} parent=1 // loop_header_branch
      %21 = sbr.rel (%p19) target = $region8
    $region5: #{tpu_custom_call.1} parent=1 // loop_body
      %s23 = ssub.s32 %s18, 1
      %s24 = ssub.s32 %s18, 2
      %s25 = sadd.s32 %s18, 1
      %s27 = sadd.s32 %s26, 1
      %p30 = scmp.eq.s32.totalorder %s18, 1
      %p31 = scmp.ne.s32.totalorder %s26, %s28
      %p32 = scmp.eq.s32.totalorder %s18, 0
      %p33 = por %p31, %p32
      %p34 = scmp.ne.s32.totalorder %s26, %s28
      %p35 = scmp.eq.s32.totalorder %s23, 1
      %p36 = por %p34, %p35
      %p37 = scmp.ne.s32.totalorder %s28, %s29
      %p38 = scmp.eq.s32.totalorder %s23, 0
      %p39 = por %p37, %p38
      %p40 = scmp.ne.s32.totalorder %s28, %s29
      %p41 = scmp.eq.s32.totalorder %s24, 1
      %p42 = por %p40, %p41
      %p44 = scmp.ne.s32.totalorder %s29, %s43
      %p45 = scmp.eq.s32.totalorder %s24, 0
      %p46 = por %p44, %p45
      %s48 = sadd.s32 %s47, 1
      %p51 = scmp.eq.s32.totalorder %s18, 1
      %p52 = scmp.ne.s32.totalorder %s47, %s49
      %p53 = scmp.eq.s32.totalorder %s18, 0
      %p54 = por %p52, %p53
      %p55 = scmp.ne.s32.totalorder %s47, %s49
      %p56 = scmp.eq.s32.totalorder %s23, 1
      %p57 = por %p55, %p56
      %p58 = scmp.ne.s32.totalorder %s49, %s50
      %p59 = scmp.eq.s32.totalorder %s23, 0
      %p60 = por %p58, %p59
      %p61 = scmp.ne.s32.totalorder %s49, %s50
      %p62 = scmp.eq.s32.totalorder %s24, 1
      %p63 = por %p61, %p62
      %p65 = scmp.ne.s32.totalorder %s50, %s64
      %p66 = scmp.eq.s32.totalorder %s24, 0
      %p67 = por %p65, %p66
      %s69 = sadd.s32 %s68, 1
      %p72 = scmp.eq.s32.totalorder %s18, 1
      %p73 = scmp.ne.s32.totalorder %s68, %s70
      %p74 = scmp.eq.s32.totalorder %s18, 0
      %p75 = por %p73, %p74
      %p76 = scmp.ne.s32.totalorder %s68, %s70
      %p77 = scmp.eq.s32.totalorder %s23, 1
      %p78 = por %p76, %p77
      %p79 = scmp.ne.s32.totalorder %s70, %s71
      %p80 = scmp.eq.s32.totalorder %s23, 0
      %p81 = por %p79, %p80
      %p82 = scmp.ne.s32.totalorder %s70, %s71
      %p83 = scmp.eq.s32.totalorder %s24, 1
      %p84 = por %p82, %p83
      %p86 = scmp.ne.s32.totalorder %s71, %s85
      %p87 = scmp.eq.s32.totalorder %s24, 0
      %p88 = por %p86, %p87
      %s90 = sadd.s32 %s89, 1
      %p93 = scmp.eq.s32.totalorder %s18, 1
      %p94 = scmp.ne.s32.totalorder %s89, %s91
      %p95 = scmp.eq.s32.totalorder %s18, 0
      %p96 = por %p94, %p95
      %p97 = scmp.ne.s32.totalorder %s89, %s91
      %p98 = scmp.eq.s32.totalorder %s23, 1
      %p99 = por %p97, %p98
      %p100 = scmp.ne.s32.totalorder %s91, %s92
      %p101 = scmp.eq.s32.totalorder %s23, 0
      %p102 = por %p100, %p101
      %p103 = scmp.ne.s32.totalorder %s91, %s92
      %p104 = scmp.eq.s32.totalorder %s24, 1
      %p105 = por %p103, %p104
      %p107 = scmp.ne.s32.totalorder %s92, %s106
      %p108 = scmp.eq.s32.totalorder %s24, 0
      %p109 = por %p107, %p108
      %s110 = ssub.s32 %s18, %s25
      %p111 = scmp.eq.s32.totalorder %s110, 0
      %s113 = sadd.s32 %s112, 1
      %s114 = scalar_select %p111, %s112, %s113
      %p117 = pneg %p111
      %p118 = scmp.eq.s32.totalorder %s18, 1
      %p119 = por %p117, %p118
      %p120 = scmp.ne.s32.totalorder %s112, %s115
      %p121 = scmp.eq.s32.totalorder %s18, 0
      %p122 = por %p120, %p121
      %p123 = scmp.ne.s32.totalorder %s112, %s115
      %p124 = scmp.eq.s32.totalorder %s23, 1
      %p125 = por %p123, %p124
      %p126 = scmp.ne.s32.totalorder %s115, %s116
      %p127 = scmp.eq.s32.totalorder %s23, 0
      %p128 = por %p126, %p127
      %p129 = scmp.ne.s32.totalorder %s115, %s116
      %p130 = scmp.eq.s32.totalorder %s24, 1
      %p131 = por %p129, %p130
      %p133 = scmp.ne.s32.totalorder %s116, %s132
      %p134 = scmp.eq.s32.totalorder %s24, 0
      %p135 = por %p133, %p134
      %s136 = ssub.s32 %s18, %s25
      %p137 = scmp.eq.s32.totalorder %s136, 0
      %s139 = sadd.s32 %s138, 1
      %s140 = scalar_select %p137, %s138, %s139
      %p143 = pneg %p137
      %p144 = scmp.eq.s32.totalorder %s18, 1
      %p145 = por %p143, %p144
      %p146 = scmp.ne.s32.totalorder %s138, %s141
      %p147 = scmp.eq.s32.totalorder %s18, 0
      %p148 = por %p146, %p147
      %p149 = scmp.ne.s32.totalorder %s138, %s141
      %p150 = scmp.eq.s32.totalorder %s23, 1
      %p151 = por %p149, %p150
      %p152 = scmp.ne.s32.totalorder %s141, %s142
      %p153 = scmp.eq.s32.totalorder %s23, 0
      %p154 = por %p152, %p153
      %p155 = scmp.ne.s32.totalorder %s141, %s142
      %p156 = scmp.eq.s32.totalorder %s24, 1
      %p157 = por %p155, %p156
      %p159 = scmp.ne.s32.totalorder %s142, %s158
      %p160 = scmp.eq.s32.totalorder %s24, 0
      %p161 = por %p159, %p160
      %s162 = ssub.s32 %s18, %s25
      %p163 = scmp.eq.s32.totalorder %s162, 0
      %s165 = sadd.s32 %s164, 1
      %s166 = scalar_select %p163, %s164, %s165
      %p169 = pneg %p163
      %p170 = scmp.eq.s32.totalorder %s18, 1
      %p171 = por %p169, %p170
      %p172 = scmp.ne.s32.totalorder %s164, %s167
      %p173 = scmp.eq.s32.totalorder %s18, 0
      %p174 = por %p172, %p173
      %p175 = scmp.ne.s32.totalorder %s164, %s167
      %p176 = scmp.eq.s32.totalorder %s23, 1
      %p177 = por %p175, %p176
      %p178 = scmp.ne.s32.totalorder %s167, %s168
      %p179 = scmp.eq.s32.totalorder %s23, 0
      %p180 = por %p178, %p179
      %p181 = scmp.ne.s32.totalorder %s167, %s168
      %p182 = scmp.eq.s32.totalorder %s24, 1
      %p183 = por %p181, %p182
      %p185 = scmp.ne.s32.totalorder %s168, %s184
      %p186 = scmp.eq.s32.totalorder %s24, 0
      %p187 = por %p185, %p186
      %s188 = ssub.s32 %s18, %s25
      %p189 = scmp.eq.s32.totalorder %s188, 0
      %s191 = sadd.s32 %s190, 1
      %s192 = scalar_select %p189, %s190, %s191
      %p195 = pneg %p189
      %p196 = scmp.eq.s32.totalorder %s18, 1
      %p197 = por %p195, %p196
      %p198 = scmp.ne.s32.totalorder %s190, %s193
      %p199 = scmp.eq.s32.totalorder %s18, 0
      %p200 = por %p198, %p199
      %p201 = scmp.ne.s32.totalorder %s190, %s193
      %p202 = scmp.eq.s32.totalorder %s23, 1
      %p203 = por %p201, %p202
      %p204 = scmp.ne.s32.totalorder %s193, %s194
      %p205 = scmp.eq.s32.totalorder %s23, 0
      %p206 = por %p204, %p205
      %p207 = scmp.ne.s32.totalorder %s193, %s194
      %p208 = scmp.eq.s32.totalorder %s24, 1
      %p209 = por %p207, %p208
      %p211 = scmp.ne.s32.totalorder %s194, %s210
      %p212 = scmp.eq.s32.totalorder %s24, 0
      %p213 = por %p211, %p212
      %s214 = ssub.s32 %s18, %s25
      %p215 = scmp.eq.s32.totalorder %s214, 0
      %s217 = sadd.s32 %s216, 1
      %s218 = scalar_select %p215, %s216, %s217
      %p221 = pneg %p215
      %p222 = scmp.eq.s32.totalorder %s18, 1
      %p223 = por %p221, %p222
      %p224 = scmp.ne.s32.totalorder %s216, %s219
      %p225 = scmp.eq.s32.totalorder %s18, 0
      %p226 = por %p224, %p225
      %p227 = scmp.ne.s32.totalorder %s216, %s219
      %p228 = scmp.eq.s32.totalorder %s23, 1
      %p229 = por %p227, %p228
      %p230 = scmp.ne.s32.totalorder %s219, %s220
      %p231 = scmp.eq.s32.totalorder %s23, 0
      %p232 = por %p230, %p231
      %p233 = scmp.ne.s32.totalorder %s219, %s220
      %p234 = scmp.eq.s32.totalorder %s24, 1
      %p235 = por %p233, %p234
      %p237 = scmp.ne.s32.totalorder %s220, %s236
      %p238 = scmp.eq.s32.totalorder %s24, 0
      %p239 = por %p237, %p238
      %s240 = ssub.s32 %s18, %s25
      %p241 = scmp.eq.s32.totalorder %s240, 0
      %s243 = sadd.s32 %s242, 1
      %s244 = scalar_select %p241, %s242, %s243
      %p247 = pneg %p241
      %p248 = scmp.eq.s32.totalorder %s18, 1
      %p249 = por %p247, %p248
      %p250 = scmp.ne.s32.totalorder %s242, %s245
      %p251 = scmp.eq.s32.totalorder %s18, 0
      %p252 = por %p250, %p251
      %p253 = scmp.ne.s32.totalorder %s242, %s245
      %p254 = scmp.eq.s32.totalorder %s23, 1
      %p255 = por %p253, %p254
      %p256 = scmp.ne.s32.totalorder %s245, %s246
      %p257 = scmp.eq.s32.totalorder %s23, 0
      %p258 = por %p256, %p257
      %p259 = scmp.ne.s32.totalorder %s245, %s246
      %p260 = scmp.eq.s32.totalorder %s24, 1
      %p261 = por %p259, %p260
      %p263 = scmp.ne.s32.totalorder %s246, %s262
      %p264 = scmp.eq.s32.totalorder %s24, 0
      %p265 = por %p263, %p264
      %s266 = ssub.s32 %s18, %s25
      %p267 = scmp.eq.s32.totalorder %s266, 0
      %s269 = sadd.s32 %s268, 1
      %s270 = scalar_select %p267, %s268, %s269
      %p273 = pneg %p267
      %p274 = scmp.eq.s32.totalorder %s18, 1
      %p275 = por %p273, %p274
      %p276 = scmp.ne.s32.totalorder %s268, %s271
      %p277 = scmp.eq.s32.totalorder %s18, 0
      %p278 = por %p276, %p277
      %p279 = scmp.ne.s32.totalorder %s268, %s271
      %p280 = scmp.eq.s32.totalorder %s23, 1
      %p281 = por %p279, %p280
      %p282 = scmp.ne.s32.totalorder %s271, %s272
      %p283 = scmp.eq.s32.totalorder %s23, 0
      %p284 = por %p282, %p283
      %p285 = scmp.ne.s32.totalorder %s271, %s272
      %p286 = scmp.eq.s32.totalorder %s24, 1
      %p287 = por %p285, %p286
      %p289 = scmp.ne.s32.totalorder %s272, %s288
      %p290 = scmp.eq.s32.totalorder %s24, 0
      %p291 = por %p289, %p290
      %s293 = sadd.s32 %s292, 1
      %p296 = scmp.eq.s32.totalorder %s18, 1
      %p297 = scmp.ne.s32.totalorder %s292, %s294
      %p298 = scmp.eq.s32.totalorder %s18, 0
      %p299 = por %p297, %p298
      %p300 = scmp.ne.s32.totalorder %s292, %s294
      %p301 = scmp.eq.s32.totalorder %s23, 1
      %p302 = por %p300, %p301
      %p303 = scmp.ne.s32.totalorder %s294, %s295
      %p304 = scmp.eq.s32.totalorder %s23, 0
      %p305 = por %p303, %p304
      %p306 = scmp.ne.s32.totalorder %s294, %s295
      %p307 = scmp.eq.s32.totalorder %s24, 1
      %p308 = por %p306, %p307
      %p310 = scmp.ne.s32.totalorder %s295, %s309
      %p311 = scmp.eq.s32.totalorder %s24, 0
      %p312 = por %p310, %p311
      %p313 = scmp.le.s32.totalorder 1, %s18
      %p314 = scmp.lt.s32.totalorder %s18, 3
      %p315 = pnand %p313, %p314
      %p316 = pneg %p315
      // Predicated region
      $region9: #{tpu_custom_call.1} parent=5 // pred_check
        _
      $region10: #{tpu_custom_call.1} parent=5 // pred_check_branch
        %318 = sbr.rel (%p315) target = $region12
      $region11: #{tpu_custom_call.1} parent=5 // pred_region
        %s319 = ssub.s32 %s18, 1
        // Predicated region
        $region13: #{tpu_custom_call.1} parent=11 // pred_check
          %p320 = pneg %p39
        $region14: #{tpu_custom_call.1} parent=11 // pred_check_branch
          %322 = sbr.rel (%p320) target = $region16
        $region15: #{tpu_custom_call.1} parent=11 // pred_region
          _
        $region16: #{tpu_custom_call.1} parent=11 // pred_fallthru
          _
        // Predicated region
        $region17: #{tpu_custom_call.1} parent=11 // pred_check
          %p323 = pneg %p60
        $region18: #{tpu_custom_call.1} parent=11 // pred_check_branch
          %325 = sbr.rel (%p323) target = $region20
        $region19: #{tpu_custom_call.1} parent=11 // pred_region
          _
        $region20: #{tpu_custom_call.1} parent=11 // pred_fallthru
          _
        // Predicated region
        $region21: #{tpu_custom_call.1} parent=11 // pred_check
          %p326 = pneg %p81
        $region22: #{tpu_custom_call.1} parent=11 // pred_check_branch
          %328 = sbr.rel (%p326) target = $region24
        $region23: #{tpu_custom_call.1} parent=11 // pred_region
          _
        $region24: #{tpu_custom_call.1} parent=11 // pred_fallthru
          _
        // Predicated region
        $region25: #{tpu_custom_call.1} parent=11 // pred_check
          %p329 = pneg %p102
        $region26: #{tpu_custom_call.1} parent=11 // pred_check_branch
          %331 = sbr.rel (%p329) target = $region28
        $region27: #{tpu_custom_call.1} parent=11 // pred_region
          _
        $region28: #{tpu_custom_call.1} parent=11 // pred_fallthru
          _
      $region12: #{tpu_custom_call.1} parent=5 // pred_fallthru
        _
      %p332 = scmp.lt.s32.totalorder %s18, 2
      // Predicated region
      $region29: #{tpu_custom_call.1} parent=5 // pred_check
        %p333 = pneg %p332
      $region30: #{tpu_custom_call.1} parent=5 // pred_check_branch
        %335 = sbr.rel (%p333) target = $region32
      $region31: #{tpu_custom_call.1} parent=5 // pred_region
        // Predicated region
        $region33: #{tpu_custom_call.1} parent=31 // pred_check
          %p336 = pneg %p122
        $region34: #{tpu_custom_call.1} parent=31 // pred_check_branch
          %338 = sbr.rel (%p336) target = $region36
        $region35: #{tpu_custom_call.1} parent=31 // pred_region
          %p339 = scmp.lt.s32.totalorder %s18, 1
          %s340 = scalar_select %p339, %s18, 1
          %s341 = smul.addr %s340, 4
          %s342 = smul.addr %s341, 4
          %s343 = scalar_lea.vmem %s4, %s342
        $region36: #{tpu_custom_call.1} parent=31 // pred_fallthru
          _
        // Predicated region
        $region37: #{tpu_custom_call.1} parent=31 // pred_check
          %p344 = pneg %p148
        $region38: #{tpu_custom_call.1} parent=31 // pred_check_branch
          %346 = sbr.rel (%p344) target = $region40
        $region39: #{tpu_custom_call.1} parent=31 // pred_region
          %p347 = scmp.lt.s32.totalorder %s18, 1
          %s348 = scalar_select %p347, %s18, 1
          %s349 = scalar_lea.vmem %s5, %s348
        $region40: #{tpu_custom_call.1} parent=31 // pred_fallthru
          _
        // Predicated region
        $region41: #{tpu_custom_call.1} parent=31 // pred_check
          %p350 = pneg %p174
        $region42: #{tpu_custom_call.1} parent=31 // pred_check_branch
          %352 = sbr.rel (%p350) target = $region44
        $region43: #{tpu_custom_call.1} parent=31 // pred_region
          %p353 = scmp.lt.s32.totalorder %s18, 1
          %s354 = scalar_select %p353, %s18, 1
          %s355 = smul.addr %s354, 4
          %s356 = smul.addr %s355, 4
          %s357 = scalar_lea.vmem %s6, %s356
        $region44: #{tpu_custom_call.1} parent=31 // pred_fallthru
          _
        // Predicated region
        $region45: #{tpu_custom_call.1} parent=31 // pred_check
          %p358 = pneg %p200
        $region46: #{tpu_custom_call.1} parent=31 // pred_check_branch
          %360 = sbr.rel (%p358) target = $region48
        $region47: #{tpu_custom_call.1} parent=31 // pred_region
          %p361 = scmp.lt.s32.totalorder %s18, 1
          %s362 = scalar_select %p361, %s18, 1
          %s363 = smul.addr %s362, 4
          %s364 = smul.addr %s363, 4
          %s365 = scalar_lea.vmem %s7, %s364
        $region48: #{tpu_custom_call.1} parent=31 // pred_fallthru
          _
        // Predicated region
        $region49: #{tpu_custom_call.1} parent=31 // pred_check
          %p366 = pneg %p226
        $region50: #{tpu_custom_call.1} parent=31 // pred_check_branch
          %368 = sbr.rel (%p366) target = $region52
        $region51: #{tpu_custom_call.1} parent=31 // pred_region
          %p369 = scmp.lt.s32.totalorder %s18, 1
          %s370 = scalar_select %p369, %s18, 1
          %s371 = scalar_lea.vmem %s8, %s370
        $region52: #{tpu_custom_call.1} parent=31 // pred_fallthru
          _
        // Predicated region
        $region53: #{tpu_custom_call.1} parent=31 // pred_check
          %p372 = pneg %p252
        $region54: #{tpu_custom_call.1} parent=31 // pred_check_branch
          %374 = sbr.rel (%p372) target = $region56
        $region55: #{tpu_custom_call.1} parent=31 // pred_region
          %p375 = scmp.lt.s32.totalorder %s18, 1
          %s376 = scalar_select %p375, %s18, 1
          %s377 = smul.addr %s376, 8
          %s378 = smul.addr %s377, 4
          %s379 = scalar_lea.vmem %s9, %s378
        $region56: #{tpu_custom_call.1} parent=31 // pred_fallthru
          _
        // Predicated region
        $region57: #{tpu_custom_call.1} parent=31 // pred_check
          %p380 = pneg %p278
        $region58: #{tpu_custom_call.1} parent=31 // pred_check_branch
          %382 = sbr.rel (%p380) target = $region60
        $region59: #{tpu_custom_call.1} parent=31 // pred_region
          %p383 = scmp.lt.s32.totalorder %s18, 1
          %s384 = scalar_select %p383, %s18, 1
          %s385 = smul.addr %s384, 8
          %s386 = scalar_lea.vmem %s10, %s385
        $region60: #{tpu_custom_call.1} parent=31 // pred_fallthru
          _
      $region32: #{tpu_custom_call.1} parent=5 // pred_fallthru
        _
      %p387 = scmp.le.s32.totalorder 1, %s18
      %p388 = scmp.lt.s32.totalorder %s18, 3
      %p389 = pnand %p387, %p388
      %p390 = pneg %p389
      // Predicated region
      $region61: #{tpu_custom_call.1} parent=5 // pred_check
        _
      $region62: #{tpu_custom_call.1} parent=5 // pred_check_branch
        %392 = sbr.rel (%p389) target = $region64
      $region63: #{tpu_custom_call.1} parent=5 // pred_region
        %s393 = ssub.s32 %s18, 1
        %p394 = pneg %p39
        %p395 = pneg %p36
        %p396 = pneg %p60
        %p397 = pneg %p57
        %p398 = pneg %p81
        %p399 = pneg %p78
        %p400 = pneg %p102
        %p401 = pneg %p99
        %p402 = scmp.lt.s32.totalorder %s23, 1
        %s403 = scalar_select %p402, %s23, 1
        %s404 = smul.addr %s403, 4
        %s405 = smul.addr %s404, 4
        %s406 = scalar_lea.vmem %s4, %s405
        %p407 = pneg %p128
        %p408 = pneg %p125
        %p409 = scmp.lt.s32.totalorder %s23, 1
        %s410 = scalar_select %p409, %s23, 1
        %s411 = scalar_lea.vmem %s5, %s410
        %p412 = pneg %p154
        %p413 = pneg %p151
        %p414 = scmp.lt.s32.totalorder %s23, 1
        %s415 = scalar_select %p414, %s23, 1
        %s416 = smul.addr %s415, 4
        %s417 = smul.addr %s416, 4
        %s418 = scalar_lea.vmem %s6, %s417
        %p419 = pneg %p180
        %p420 = pneg %p177
        %p421 = scmp.lt.s32.totalorder %s23, 1
        %s422 = scalar_select %p421, %s23, 1
        %s423 = smul.addr %s422, 4
        %s424 = smul.addr %s423, 4
        %s425 = scalar_lea.vmem %s7, %s424
        %p426 = pneg %p206
        %p427 = pneg %p203
        %p428 = scmp.lt.s32.totalorder %s23, 1
        %s429 = scalar_select %p428, %s23, 1
        %s430 = scalar_lea.vmem %s8, %s429
        %p431 = pneg %p232
        %p432 = pneg %p229
        %p433 = scmp.lt.s32.totalorder %s23, 1
        %s434 = scalar_select %p433, %s23, 1
        %s435 = smul.addr %s434, 8
        %s436 = smul.addr %s435, 4
        %s437 = scalar_lea.vmem %s9, %s436
        %p438 = pneg %p258
        %p439 = pneg %p255
        %p440 = scmp.lt.s32.totalorder %s23, 1
        %s441 = scalar_select %p440, %s23, 1
        %s442 = smul.addr %s441, 8
        %s443 = scalar_lea.vmem %s10, %s442
        %p444 = pneg %p284
        %p445 = pneg %p281
        %p446 = pneg %p305
        %p447 = pneg %p302
        %p448 = scmp.lt.s32.totalorder %s23, 1
        %s449 = scalar_select %p448, %s23, 1
        %s450 = smul.addr %s449, 4
        %s451 = smul.addr %s450, 4
        %s452 = scalar_lea.vmem %s4, %s451
        %p453 = scmp.lt.s32.totalorder %s23, 1
        %s454 = scalar_select %p453, %s23, 1
        %s455 = scalar_lea.vmem %s5, %s454
        %p456 = scmp.lt.s32.totalorder %s23, 1
        %s457 = scalar_select %p456, %s23, 1
        %s458 = smul.addr %s457, 4
        %s459 = smul.addr %s458, 4
        %s460 = scalar_lea.vmem %s6, %s459
        %p461 = scmp.lt.s32.totalorder %s23, 1
        %s462 = scalar_select %p461, %s23, 1
        %s463 = smul.addr %s462, 4
        %s464 = smul.addr %s463, 4
        %s465 = scalar_lea.vmem %s7, %s464
        %p466 = scmp.lt.s32.totalorder %s23, 1
        %s467 = scalar_select %p466, %s23, 1
        %s468 = scalar_lea.vmem %s8, %s467
        %p469 = scmp.lt.s32.totalorder %s23, 1
        %s470 = scalar_select %p469, %s23, 1
        %s471 = smul.addr %s470, 8
        %s472 = smul.addr %s471, 4
        %s473 = scalar_lea.vmem %s9, %s472
        %p474 = scmp.lt.s32.totalorder %s23, 1
        %s475 = scalar_select %p474, %s23, 1
        %s476 = smul.addr %s475, 8
        %s477 = scalar_lea.vmem %s10, %s476
        %p479 = scmp.eq.s32.totalorder %s23, 0
        // Predicated region
        $region65: #{tpu_custom_call.1} parent=63 // pred_check
          %p480 = pneg %p479
        $region66: #{tpu_custom_call.1} parent=63 // pred_check_branch
          %482 = sbr.rel (%p480) target = $region68
        $region67: #{tpu_custom_call.1} parent=63 // pred_region
          %v483 = vld [vmem:[%s0] sm:$0x3]
          %v484 = vlaneseq
          %v485 = vand.u32 %v484, 127
          %v486 = vperm.slane %v483, 0
          %v487 = vlaneseq
          %v488 = vshrl.u32 %v487, 7
          %490 = vset.pattern.permute.xlu0 %v488
          %491 = vperm.xlu0 %490, %v486
          %v492 = vpop.permute.xlu0 %491
          %v493 = vperm.slane %v483, 1
          %v494 = vlaneseq
          %v495 = vshrl.u32 %v494, 7
          %497 = vset.pattern.permute.xlu0 %v495
          %498 = vperm.xlu0 %497, %v493
          %v499 = vpop.permute.xlu0 %498
          %vm500 = vcmp.eq.s32.totalorder %v492, %v485
          %vm501 = vcmp.eq.s32.totalorder %v499, %v485
          %v502 = vsel %vm500, 1, 0
          %v503 = vsel %vm501, 1, 0
          %v504 = vcvt.s32.f32 %v502
          %v505 = vcvt.s32.f32 %v503
          %v506 = vld [vmem:[%s2] sm:$0xff]
          %v507 = vld [vmem:[%s2 + $0x8] sm:$0xff]
          %v508 = vld [vmem:[%s2 + $0x10] sm:$0xff]
          %v509 = vld [vmem:[%s2 + $0x18] sm:$0xff]
          %v510 = vld [vmem:[%s2 + $0x20] sm:$0xff]
          %v511 = vld [vmem:[%s2 + $0x28] sm:$0xff]
          %v512 = vld [vmem:[%s2 + $0x30] sm:$0xff]
          %vm513 = vcmask 457728
          %v515 = vsel %vm513, %v504, 0
          %v518 = vsel %vm513, %v505, 0
          %520 = vmatpush.msra.mxu0 0.0
          %521 = vmatpush.msra.mxu0 0.0
          %522 = vmatpush.msra.mxu0 0.0
          %523 = vmatpush.msra.mxu0 0.0
          %524 = vmatpush.msra.mxu0 0.0
          %525 = vmatpush.msra.mxu0 0.0
          %526 = vmatpush.msra.mxu0 0.0
          %527 = vmatpush.msra.mxu0 0.0
          %528 = vmatpush.msra.mxu0 0.0
          %529 = vmatpush.msra.mxu0 %v512
          %530 = vmatpush.msra.mxu0 %v511
          %531 = vmatpush.msra.mxu0 %v510
          %532 = vmatpush.msra.mxu0 %v509
          %533 = vmatpush.msra.mxu0 %v508
          %534 = vmatpush.msra.mxu0 %v507
          %535 = vmatpush.msra.mxu0 %v506
          %536 = vmatmul.f32.gmra.mxu0 %v515
          %v537 = vpop.f32.mrf.mxu0
          %v538 = vadd.f32 0.0, %v537
          %539 = vmatmul.f32.gmra.mxu0 %v518
          %v540 = vpop.f32.mrf.mxu0
          %v541 = vadd.f32 0.0, %v540
          %542 = vdwg.mxu0
          %v543 = vmul.f32 %v538, 5.656854
          %v544 = vmul.f32 %v541, 5.656854
          %v545 = vld [vmem:[%s3] sm:$0xff]
          %v546 = vadd.f32 %v543, %v545
          %v547 = vadd.f32 %v544, %v545
          %vm548 = vcmask 261120
          %549 = vst.msk [vmem:[#allocation2] sm:$0xff] %vm548, %v546
          %550 = vst.msk [vmem:[#allocation2 + $0x8] sm:$0xff] %vm548, %v547
        $region68: #{tpu_custom_call.1} parent=63 // pred_fallthru
          _
        %v551 = vld [vmem:[#allocation2] sm:$0xff]
        %v552 = vld [vmem:[#allocation2 + $0x8] sm:$0xff]
        %v553 = vld [vmem:[%s477] sm:$0x3f]
        %v554 = vld [vmem:[%s452] sm:$0xf]
        %v555 = vld [vmem:[%s452 + $0x4] sm:$0xf]
        %v556 = vld [vmem:[%s452 + $0x8] sm:$0xf]
        %v557 = vld [vmem:[%s452 + $0xc] sm:$0xf]
        %v558 = vpack.c.bf16 %v552, %v551
        %v559 = vld [vmem:[%s455] sm:$0x1]
        %v561 = vperm.slane %v559, 0
        %v567 = vunpack.c.l.b16 %v554
        %v568 = vunpack.c.l.b16 %v555
        %v569 = vunpack.c.l.b16 %v556
        %v570 = vunpack.c.l.b16 %v557
        %v571 = vpack.c.b16 %v568, %v567
        %v572 = vpack.c.b16 %v570, %v569
        %vm575 = vcmask 261120
        %v577 = vsel %vm575, %v558, 0
        %579 = vmatpush.bf16.msra.mxu0 0
        %580 = vmatpush.bf16.msra.mxu0 0
        %581 = vmatpush.bf16.msra.mxu0 0
        %582 = vmatpush.bf16.msra.mxu0 0
        %583 = vmatpush.bf16.msra.mxu0 0
        %584 = vmatpush.bf16.msra.mxu0 0
        %585 = vmatpush.bf16.msra.mxu0 %v572
        %586 = vmatpush.bf16.msra.mxu0 %v571
        %587 = vmatmul.bf16.gmra.mxu0 %v577
        %v588 = vpop.f32.mrf.mxu0
        %v589 = vadd.f32 %v561, %v588
        %v590 = vpop.f32.mrf.mxu0
        %v591 = vadd.f32 %v561, %v590
        %592 = vdwg.mxu0
        %v593 = vld [vmem:[%s1] sm:$0x3]
        %vm594 = vcmp.gt.f32.partialorder %v593, 0.0
        %v595 = vsel %vm594, 1, 0
        %v596 = vrot.slane %v595, 1
        %vm597 = vcmp.ne.s32.totalorder %v596, 0
        %v598 = vld [vmem:[%s460] sm:$0xf]
        %v599 = vld [vmem:[%s460 + $0x4] sm:$0xf]
        %v600 = vld [vmem:[%s460 + $0x8] sm:$0xf]
        %v601 = vld [vmem:[%s460 + $0xc] sm:$0xf]
        %v602 = vpack.c.bf16 %v589, %v589
        %v603 = vpack.c.bf16 %v591, %v591
        %v605 = vunpack.c.l.b16 %v602
        %v606 = vpack.c.b16 %v605, %v605
        %607 = vrot.lane.b32.xlu0 %v606, 96
        %v608 = vpop.permute.xlu0 %607
        %vm609 = vcmask 64512
        %v611 = vsel %vm609, %v602, 0
        %v614 = vsel %vm609, %v608, 0
        %616 = vmatpush.bf16.xpose.msra.mxu0 0
        %617 = vmatpush.bf16.xpose.msra.mxu0 0
        %618 = vmatpush.bf16.xpose.msra.mxu0 0
        %619 = vmatpush.bf16.xpose.msra.mxu0 0
        %620 = vmatpush.bf16.xpose.msra.mxu0 0
        %621 = vmatpush.bf16.xpose.msra.mxu0 0
        %622 = vmatpush.bf16.xpose.msra.mxu0 0
        %623 = vmatpush.bf16.xpose.msra.mxu0 %v614
        %624 = vmatmul.bf16.gmra.mxu0 %v611
        %v625 = vpop.f32.mrf.mxu0
        %v626 = vadd.f32 0.0, %v625
        %v627 = vpop.f32.mrf.mxu0
        %628 = vdwg.mxu0
        %v630 = vunpack.c.l.b16 %v603
        %v631 = vpack.c.b16 %v630, %v630
        %632 = vrot.lane.b32.xlu0 %v631, 96
        %v633 = vpop.permute.xlu0 %632
        %v635 = vsel %vm609, %v603, 0
        %v638 = vsel %vm609, %v633, 0
        %640 = vmatpush.bf16.xpose.msra.mxu0 0
        %641 = vmatpush.bf16.xpose.msra.mxu0 0
        %642 = vmatpush.bf16.xpose.msra.mxu0 0
        %643 = vmatpush.bf16.xpose.msra.mxu0 0
        %644 = vmatpush.bf16.xpose.msra.mxu0 0
        %645 = vmatpush.bf16.xpose.msra.mxu0 0
        %646 = vmatpush.bf16.xpose.msra.mxu0 0
        %647 = vmatpush.bf16.xpose.msra.mxu0 %v638
        %648 = vmatmul.bf16.gmra.mxu0 %v635
        %v649 = vpop.f32.mrf.mxu0
        %v650 = vadd.f32 0.0, %v649
        %v651 = vpop.f32.mrf.mxu0
        %652 = vdwg.mxu0
        %v653 = vsel %vm597, 1, 0
        %v654 = vperm.slane %v595, 0
        %v655 = vperm.slane %v653, 0
        %vm656 = vcmp.eq.s32.totalorder %v654, 1
        %vm657 = vcmp.eq.s32.totalorder %v655, 1
        %v658 = vsel %vm656, %v626, -1e+10
        %v659 = vsel %vm657, %v650, -1e+10
        %v660 = vsel %vm609, %v658, -inf
        %661 = vmax.xlane.f32.xlu0 %v660
        %v662 = vpop.xlane.xlu0 %661
        %v663 = vsel %vm609, %v659, -inf
        %664 = vmax.xlane.f32.xlu0 %v663
        %v665 = vpop.xlane.xlu0 %664
        %v666 = vsub.f32 %v658, %v662
        %v667 = vsub.f32 %v659, %v665
        %v668 = vmul.f32 %v666, 1.442695
        %v669 = vpow.pop %v668
        %v670 = vmul.f32 %v667, 1.442695
        %v671 = vpow.pop %v670
        %v672 = vsel %vm609, %v669, 0.0
        %673 = vadd.xlane.f32.xlu0 %v672
        %v674 = vpop.xlane.xlu0 %673
        %v675 = vsel %vm609, %v671, 0.0
        %676 = vadd.xlane.f32.xlu0 %v675
        %v677 = vpop.xlane.xlu0 %676
        %v678 = vrcp.pop %v674
        %v679 = vrcp.pop %v677
        %v680 = vmul.f32 %v669, %v678
        %v681 = vmul.f32 %v671, %v679
        %v682 = vpack.c.bf16 %v680, %v680
        %v683 = vpack.c.bf16 %v681, %v681
        %684 = vrot.lane.b32.xlu0 %v606, 64
        %v685 = vpop.permute.xlu0 %684
        %v687 = vsel %vm609, %v682, 0
        %vm689 = vcmask 1043456
        %v691 = vsel %vm689, %v685, 0
        %693 = vmatpush.bf16.msra.mxu0 0
        %694 = vmatpush.bf16.msra.mxu0 0
        %695 = vmatpush.bf16.msra.mxu0 0
        %696 = vmatpush.bf16.msra.mxu0 0
        %697 = vmatpush.bf16.msra.mxu0 0
        %698 = vmatpush.bf16.msra.mxu0 0
        %699 = vmatpush.bf16.msra.mxu0 0
        %700 = vmatpush.bf16.msra.mxu0 %v691
        %701 = vmatmul.bf16.gmra.mxu0 %v687
        %v702 = vpop.f32.mrf.mxu0
        %v703 = vadd.f32 0.0, %v702
        %v704 = vpop.f32.mrf.mxu0
        %705 = vdwg.mxu0
        %706 = vrot.lane.b32.xlu0 %v631, 64
        %v707 = vpop.permute.xlu0 %706
        %v709 = vsel %vm609, %v683, 0
        %v712 = vsel %vm689, %v707, 0
        %714 = vmatpush.bf16.msra.mxu0 0
        %715 = vmatpush.bf16.msra.mxu0 0
        %716 = vmatpush.bf16.msra.mxu0 0
        %717 = vmatpush.bf16.msra.mxu0 0
        %718 = vmatpush.bf16.msra.mxu0 0
        %719 = vmatpush.bf16.msra.mxu0 0
        %720 = vmatpush.bf16.msra.mxu0 0
        %721 = vmatpush.bf16.msra.mxu0 %v712
        %722 = vmatmul.bf16.gmra.mxu0 %v709
        %v723 = vpop.f32.mrf.mxu0
        %v724 = vadd.f32 0.0, %v723
        %v725 = vpop.f32.mrf.mxu0
        %726 = vdwg.mxu0
        %v727 = vpack.c.bf16 %v724, %v703
        %728 = vrot.lane.b32.xlu0 %v606, 120
        %v729 = vpop.permute.xlu0 %728
        %730 = vrot.lane.b32.xlu0 %v606, 88
        %v731 = vpop.permute.xlu0 %730
        %v733 = vsel %vm609, %v729, 0
        %v736 = vsel %vm609, %v731, 0
        %738 = vmatpush.bf16.xpose.msra.mxu0 0
        %739 = vmatpush.bf16.xpose.msra.mxu0 0
        %740 = vmatpush.bf16.xpose.msra.mxu0 0
        %741 = vmatpush.bf16.xpose.msra.mxu0 0
        %742 = vmatpush.bf16.xpose.msra.mxu0 0
        %743 = vmatpush.bf16.xpose.msra.mxu0 0
        %744 = vmatpush.bf16.xpose.msra.mxu0 0
        %745 = vmatpush.bf16.xpose.msra.mxu0 %v736
        %746 = vmatmul.bf16.gmra.mxu0 %v733
        %v747 = vpop.f32.mrf.mxu0
        %v748 = vadd.f32 0.0, %v747
        %v749 = vpop.f32.mrf.mxu0
        %750 = vdwg.mxu0
        %751 = vrot.lane.b32.xlu0 %v631, 120
        %v752 = vpop.permute.xlu0 %751
        %753 = vrot.lane.b32.xlu0 %v631, 88
        %v754 = vpop.permute.xlu0 %753
        %v756 = vsel %vm609, %v752, 0
        %v759 = vsel %vm609, %v754, 0
        %761 = vmatpush.bf16.xpose.msra.mxu0 0
        %762 = vmatpush.bf16.xpose.msra.mxu0 0
        %763 = vmatpush.bf16.xpose.msra.mxu0 0
        %764 = vmatpush.bf16.xpose.msra.mxu0 0
        %765 = vmatpush.bf16.xpose.msra.mxu0 0
        %766 = vmatpush.bf16.xpose.msra.mxu0 0
        %767 = vmatpush.bf16.xpose.msra.mxu0 0
        %768 = vmatpush.bf16.xpose.msra.mxu0 %v759
        %769 = vmatmul.bf16.gmra.mxu0 %v756
        %v770 = vpop.f32.mrf.mxu0
        %v771 = vadd.f32 0.0, %v770
        %v772 = vpop.f32.mrf.mxu0
        %773 = vdwg.mxu0
        %v774 = vsel %vm656, %v748, -1e+10
        %v775 = vsel %vm657, %v771, -1e+10
        %v776 = vsel %vm609, %v774, -inf
        %777 = vmax.xlane.f32.xlu0 %v776
        %v778 = vpop.xlane.xlu0 %777
        %v779 = vsel %vm609, %v775, -inf
        %780 = vmax.xlane.f32.xlu0 %v779
        %v781 = vpop.xlane.xlu0 %780
        %v782 = vsub.f32 %v774, %v778
        %v783 = vsub.f32 %v775, %v781
        %v784 = vmul.f32 %v782, 1.442695
        %v785 = vpow.pop %v784
        %v786 = vmul.f32 %v783, 1.442695
        %v787 = vpow.pop %v786
        %v788 = vsel %vm609, %v785, 0.0
        %789 = vadd.xlane.f32.xlu0 %v788
        %v790 = vpop.xlane.xlu0 %789
        %v791 = vsel %vm609, %v787, 0.0
        %792 = vadd.xlane.f32.xlu0 %v791
        %v793 = vpop.xlane.xlu0 %792
        %v794 = vrcp.pop %v790
        %v795 = vrcp.pop %v793
        %v796 = vmul.f32 %v785, %v794
        %v797 = vmul.f32 %v787, %v795
        %v798 = vpack.c.bf16 %v796, %v796
        %v799 = vpack.c.bf16 %v797, %v797
        %800 = vrot.lane.b32.xlu0 %v606, 56
        %v801 = vpop.permute.xlu0 %800
        %v803 = vsel %vm609, %v798, 0
        %v806 = vsel %vm689, %v801, 0
        %808 = vmatpush.bf16.msra.mxu0 0
        %809 = vmatpush.bf16.msra.mxu0 0
        %810 = vmatpush.bf16.msra.mxu0 0
        %811 = vmatpush.bf16.msra.mxu0 0
        %812 = vmatpush.bf16.msra.mxu0 0
        %813 = vmatpush.bf16.msra.mxu0 0
        %814 = vmatpush.bf16.msra.mxu0 0
        %815 = vmatpush.bf16.msra.mxu0 %v806
        %816 = vmatmul.bf16.gmra.mxu0 %v803
        %v817 = vpop.f32.mrf.mxu0
        %v818 = vadd.f32 0.0, %v817
        %v819 = vpop.f32.mrf.mxu0
        %820 = vdwg.mxu0
        %821 = vrot.lane.b32.xlu0 %v631, 56
        %v822 = vpop.permute.xlu0 %821
        %v824 = vsel %vm609, %v799, 0
        %v827 = vsel %vm689, %v822, 0
        %829 = vmatpush.bf16.msra.mxu0 0
        %830 = vmatpush.bf16.msra.mxu0 0
        %831 = vmatpush.bf16.msra.mxu0 0
        %832 = vmatpush.bf16.msra.mxu0 0
        %833 = vmatpush.bf16.msra.mxu0 0
        %834 = vmatpush.bf16.msra.mxu0 0
        %835 = vmatpush.bf16.msra.mxu0 0
        %836 = vmatpush.bf16.msra.mxu0 %v827
        %837 = vmatmul.bf16.gmra.mxu0 %v824
        %v838 = vpop.f32.mrf.mxu0
        %v839 = vadd.f32 0.0, %v838
        %v840 = vpop.f32.mrf.mxu0
        %841 = vdwg.mxu0
        %v842 = vpack.c.bf16 %v839, %v818
        %v844 = vsel %vm609, %v842, 0
        %v847 = vsel %vm689, %v599, 0
        %849 = vmatpush.bf16.msra.mxu0 0
        %850 = vmatpush.bf16.msra.mxu0 0
        %851 = vmatpush.bf16.msra.mxu0 0
        %852 = vmatpush.bf16.msra.mxu0 0
        %853 = vmatpush.bf16.msra.mxu0 0
        %854 = vmatpush.bf16.msra.mxu0 0
        %855 = vmatpush.bf16.msra.mxu0 0
        %856 = vmatpush.bf16.msra.mxu0 %v847
        %857 = vmatmul.bf16.gmra.mxu0 %v844
        %v858 = vpop.f32.mrf.mxu0
        %v859 = vadd.f32 0.0, %v858
        %v860 = vpop.f32.mrf.mxu0
        %v861 = vadd.f32 0.0, %v860
        %862 = vdwg.mxu0
        %v864 = vsel %vm609, %v727, 0
        %v867 = vsel %vm689, %v598, 0
        %869 = vmatpush.bf16.msra.mxu0 0
        %870 = vmatpush.bf16.msra.mxu0 0
        %871 = vmatpush.bf16.msra.mxu0 0
        %872 = vmatpush.bf16.msra.mxu0 0
        %873 = vmatpush.bf16.msra.mxu0 0
        %874 = vmatpush.bf16.msra.mxu0 0
        %875 = vmatpush.bf16.msra.mxu0 0
        %876 = vmatpush.bf16.msra.mxu0 %v867
        %877 = vmatmul.bf16.gmra.mxu0 %v864
        %v878 = vpop.f32.mrf.mxu0
        %v879 = vadd.f32 %v859, %v878
        %v880 = vpop.f32.mrf.mxu0
        %v881 = vadd.f32 %v861, %v880
        %882 = vdwg.mxu0
        %883 = vrot.lane.b32.xlu0 %v606, 112
        %v884 = vpop.permute.xlu0 %883
        %885 = vrot.lane.b32.xlu0 %v606, 80
        %v886 = vpop.permute.xlu0 %885
        %v888 = vsel %vm609, %v884, 0
        %v891 = vsel %vm609, %v886, 0
        %893 = vmatpush.bf16.xpose.msra.mxu0 0
        %894 = vmatpush.bf16.xpose.msra.mxu0 0
        %895 = vmatpush.bf16.xpose.msra.mxu0 0
        %896 = vmatpush.bf16.xpose.msra.mxu0 0
        %897 = vmatpush.bf16.xpose.msra.mxu0 0
        %898 = vmatpush.bf16.xpose.msra.mxu0 0
        %899 = vmatpush.bf16.xpose.msra.mxu0 0
        %900 = vmatpush.bf16.xpose.msra.mxu0 %v891
        %901 = vmatmul.bf16.gmra.mxu0 %v888
        %v902 = vpop.f32.mrf.mxu0
        %v903 = vadd.f32 0.0, %v902
        %v904 = vpop.f32.mrf.mxu0
        %905 = vdwg.mxu0
        %906 = vrot.lane.b32.xlu0 %v631, 112
        %v907 = vpop.permute.xlu0 %906
        %908 = vrot.lane.b32.xlu0 %v631, 80
        %v909 = vpop.permute.xlu0 %908
        %v911 = vsel %vm609, %v907, 0
        %v914 = vsel %vm609, %v909, 0
        %916 = vmatpush.bf16.xpose.msra.mxu0 0
        %917 = vmatpush.bf16.xpose.msra.mxu0 0
        %918 = vmatpush.bf16.xpose.msra.mxu0 0
        %919 = vmatpush.bf16.xpose.msra.mxu0 0
        %920 = vmatpush.bf16.xpose.msra.mxu0 0
        %921 = vmatpush.bf16.xpose.msra.mxu0 0
        %922 = vmatpush.bf16.xpose.msra.mxu0 0
        %923 = vmatpush.bf16.xpose.msra.mxu0 %v914
        %924 = vmatmul.bf16.gmra.mxu0 %v911
        %v925 = vpop.f32.mrf.mxu0
        %v926 = vadd.f32 0.0, %v925
        %v927 = vpop.f32.mrf.mxu0
        %928 = vdwg.mxu0
        %v929 = vsel %vm656, %v903, -1e+10
        %v930 = vsel %vm657, %v926, -1e+10
        %v931 = vsel %vm609, %v929, -inf
        %932 = vmax.xlane.f32.xlu0 %v931
        %v933 = vpop.xlane.xlu0 %932
        %v934 = vsel %vm609, %v930, -inf
        %935 = vmax.xlane.f32.xlu0 %v934
        %v936 = vpop.xlane.xlu0 %935
        %v937 = vsub.f32 %v929, %v933
        %v938 = vsub.f32 %v930, %v936
        %v939 = vmul.f32 %v937, 1.442695
        %v940 = vpow.pop %v939
        %v941 = vmul.f32 %v938, 1.442695
        %v942 = vpow.pop %v941
        %v943 = vsel %vm609, %v940, 0.0
        %944 = vadd.xlane.f32.xlu0 %v943
        %v945 = vpop.xlane.xlu0 %944
        %v946 = vsel %vm609, %v942, 0.0
        %947 = vadd.xlane.f32.xlu0 %v946
        %v948 = vpop.xlane.xlu0 %947
        %v949 = vrcp.pop %v945
        %v950 = vrcp.pop %v948
        %v951 = vmul.f32 %v940, %v949
        %v952 = vmul.f32 %v942, %v950
        %v953 = vpack.c.bf16 %v951, %v951
        %v954 = vpack.c.bf16 %v952, %v952
        %955 = vrot.lane.b32.xlu0 %v606, 48
        %v956 = vpop.permute.xlu0 %955
        %v958 = vsel %vm609, %v953, 0
        %v961 = vsel %vm689, %v956, 0
        %963 = vmatpush.bf16.msra.mxu0 0
        %964 = vmatpush.bf16.msra.mxu0 0
        %965 = vmatpush.bf16.msra.mxu0 0
        %966 = vmatpush.bf16.msra.mxu0 0
        %967 = vmatpush.bf16.msra.mxu0 0
        %968 = vmatpush.bf16.msra.mxu0 0
        %969 = vmatpush.bf16.msra.mxu0 0
        %970 = vmatpush.bf16.msra.mxu0 %v961
        %971 = vmatmul.bf16.gmra.mxu0 %v958
        %v972 = vpop.f32.mrf.mxu0
        %v973 = vadd.f32 0.0, %v972
        %v974 = vpop.f32.mrf.mxu0
        %975 = vdwg.mxu0
        %976 = vrot.lane.b32.xlu0 %v631, 48
        %v977 = vpop.permute.xlu0 %976
        %v979 = vsel %vm609, %v954, 0
        %v982 = vsel %vm689, %v977, 0
        %984 = vmatpush.bf16.msra.mxu0 0
        %985 = vmatpush.bf16.msra.mxu0 0
        %986 = vmatpush.bf16.msra.mxu0 0
        %987 = vmatpush.bf16.msra.mxu0 0
        %988 = vmatpush.bf16.msra.mxu0 0
        %989 = vmatpush.bf16.msra.mxu0 0
        %990 = vmatpush.bf16.msra.mxu0 0
        %991 = vmatpush.bf16.msra.mxu0 %v982
        %992 = vmatmul.bf16.gmra.mxu0 %v979
        %v993 = vpop.f32.mrf.mxu0
        %v994 = vadd.f32 0.0, %v993
        %v995 = vpop.f32.mrf.mxu0
        %996 = vdwg.mxu0
        %v997 = vpack.c.bf16 %v994, %v973
        %v999 = vsel %vm609, %v997, 0
        %v1002 = vsel %vm689, %v600, 0
        %1004 = vmatpush.bf16.msra.mxu0 0
        %1005 = vmatpush.bf16.msra.mxu0 0
        %1006 = vmatpush.bf16.msra.mxu0 0
        %1007 = vmatpush.bf16.msra.mxu0 0
        %1008 = vmatpush.bf16.msra.mxu0 0
        %1009 = vmatpush.bf16.msra.mxu0 0
        %1010 = vmatpush.bf16.msra.mxu0 0
        %1011 = vmatpush.bf16.msra.mxu0 %v1002
        %1012 = vmatmul.bf16.gmra.mxu0 %v999
        %v1013 = vpop.f32.mrf.mxu0
        %v1014 = vadd.f32 0.0, %v1013
        %v1015 = vpop.f32.mrf.mxu0
        %v1016 = vadd.f32 0.0, %v1015
        %1017 = vdwg.mxu0
        %v1018 = vadd.f32 %v879, %v1014
        %v1019 = vadd.f32 %v881, %v1016
        %1020 = vrot.lane.b32.xlu0 %v606, 104
        %v1021 = vpop.permute.xlu0 %1020
        %1022 = vrot.lane.b32.xlu0 %v606, 72
        %v1023 = vpop.permute.xlu0 %1022
        %v1025 = vsel %vm609, %v1021, 0
        %v1028 = vsel %vm609, %v1023, 0
        %1030 = vmatpush.bf16.xpose.msra.mxu0 0
        %1031 = vmatpush.bf16.xpose.msra.mxu0 0
        %1032 = vmatpush.bf16.xpose.msra.mxu0 0
        %1033 = vmatpush.bf16.xpose.msra.mxu0 0
        %1034 = vmatpush.bf16.xpose.msra.mxu0 0
        %1035 = vmatpush.bf16.xpose.msra.mxu0 0
        %1036 = vmatpush.bf16.xpose.msra.mxu0 0
        %1037 = vmatpush.bf16.xpose.msra.mxu0 %v1028
        %1038 = vmatmul.bf16.gmra.mxu0 %v1025
        %v1039 = vpop.f32.mrf.mxu0
        %v1040 = vadd.f32 0.0, %v1039
        %v1041 = vpop.f32.mrf.mxu0
        %1042 = vdwg.mxu0
        %1043 = vrot.lane.b32.xlu0 %v631, 104
        %v1044 = vpop.permute.xlu0 %1043
        %1045 = vrot.lane.b32.xlu0 %v631, 72
        %v1046 = vpop.permute.xlu0 %1045
        %v1048 = vsel %vm609, %v1044, 0
        %v1051 = vsel %vm609, %v1046, 0
        %1053 = vmatpush.bf16.xpose.msra.mxu0 0
        %1054 = vmatpush.bf16.xpose.msra.mxu0 0
        %1055 = vmatpush.bf16.xpose.msra.mxu0 0
        %1056 = vmatpush.bf16.xpose.msra.mxu0 0
        %1057 = vmatpush.bf16.xpose.msra.mxu0 0
        %1058 = vmatpush.bf16.xpose.msra.mxu0 0
        %1059 = vmatpush.bf16.xpose.msra.mxu0 0
        %1060 = vmatpush.bf16.xpose.msra.mxu0 %v1051
        %1061 = vmatmul.bf16.gmra.mxu0 %v1048
        %v1062 = vpop.f32.mrf.mxu0
        %v1063 = vadd.f32 0.0, %v1062
        %v1064 = vpop.f32.mrf.mxu0
        %1065 = vdwg.mxu0
        %v1066 = vsel %vm656, %v1040, -1e+10
        %v1067 = vsel %vm657, %v1063, -1e+10
        %v1068 = vsel %vm609, %v1066, -inf
        %1069 = vmax.xlane.f32.xlu0 %v1068
        %v1070 = vpop.xlane.xlu0 %1069
        %v1071 = vsel %vm609, %v1067, -inf
        %1072 = vmax.xlane.f32.xlu0 %v1071
        %v1073 = vpop.xlane.xlu0 %1072
        %v1074 = vsub.f32 %v1066, %v1070
        %v1075 = vsub.f32 %v1067, %v1073
        %v1076 = vmul.f32 %v1074, 1.442695
        %v1077 = vpow.pop %v1076
        %v1078 = vmul.f32 %v1075, 1.442695
        %v1079 = vpow.pop %v1078
        %v1080 = vsel %vm609, %v1077, 0.0
        %1081 = vadd.xlane.f32.xlu0 %v1080
        %v1082 = vpop.xlane.xlu0 %1081
        %v1083 = vsel %vm609, %v1079, 0.0
        %1084 = vadd.xlane.f32.xlu0 %v1083
        %v1085 = vpop.xlane.xlu0 %1084
        %v1086 = vrcp.pop %v1082
        %v1087 = vrcp.pop %v1085
        %v1088 = vmul.f32 %v1077, %v1086
        %v1089 = vmul.f32 %v1079, %v1087
        %v1090 = vpack.c.bf16 %v1088, %v1088
        %v1091 = vpack.c.bf16 %v1089, %v1089
        %1092 = vrot.lane.b32.xlu0 %v606, 40
        %v1093 = vpop.permute.xlu0 %1092
        %v1095 = vsel %vm609, %v1090, 0
        %v1098 = vsel %vm689, %v1093, 0
        %1100 = vmatpush.bf16.msra.mxu0 0
        %1101 = vmatpush.bf16.msra.mxu0 0
        %1102 = vmatpush.bf16.msra.mxu0 0
        %1103 = vmatpush.bf16.msra.mxu0 0
        %1104 = vmatpush.bf16.msra.mxu0 0
        %1105 = vmatpush.bf16.msra.mxu0 0
        %1106 = vmatpush.bf16.msra.mxu0 0
        %1107 = vmatpush.bf16.msra.mxu0 %v1098
        %1108 = vmatmul.bf16.gmra.mxu0 %v1095
        %v1109 = vpop.f32.mrf.mxu0
        %v1110 = vadd.f32 0.0, %v1109
        %v1111 = vpop.f32.mrf.mxu0
        %1112 = vdwg.mxu0
        %1113 = vrot.lane.b32.xlu0 %v631, 40
        %v1114 = vpop.permute.xlu0 %1113
        %v1116 = vsel %vm609, %v1091, 0
        %v1119 = vsel %vm689, %v1114, 0
        %1121 = vmatpush.bf16.msra.mxu0 0
        %1122 = vmatpush.bf16.msra.mxu0 0
        %1123 = vmatpush.bf16.msra.mxu0 0
        %1124 = vmatpush.bf16.msra.mxu0 0
        %1125 = vmatpush.bf16.msra.mxu0 0
        %1126 = vmatpush.bf16.msra.mxu0 0
        %1127 = vmatpush.bf16.msra.mxu0 0
        %1128 = vmatpush.bf16.msra.mxu0 %v1119
        %1129 = vmatmul.bf16.gmra.mxu0 %v1116
        %v1130 = vpop.f32.mrf.mxu0
        %v1131 = vadd.f32 0.0, %v1130
        %v1132 = vpop.f32.mrf.mxu0
        %1133 = vdwg.mxu0
        %v1134 = vpack.c.bf16 %v1131, %v1110
        %v1136 = vsel %vm609, %v1134, 0
        %v1139 = vsel %vm689, %v601, 0
        %1141 = vmatpush.bf16.msra.mxu0 0
        %1142 = vmatpush.bf16.msra.mxu0 0
        %1143 = vmatpush.bf16.msra.mxu0 0
        %1144 = vmatpush.bf16.msra.mxu0 0
        %1145 = vmatpush.bf16.msra.mxu0 0
        %1146 = vmatpush.bf16.msra.mxu0 0
        %1147 = vmatpush.bf16.msra.mxu0 0
        %1148 = vmatpush.bf16.msra.mxu0 %v1139
        %1149 = vmatmul.bf16.gmra.mxu0 %v1136
        %v1150 = vpop.f32.mrf.mxu0
        %v1151 = vadd.f32 0.0, %v1150
        %v1152 = vpop.f32.mrf.mxu0
        %v1153 = vadd.f32 0.0, %v1152
        %1154 = vdwg.mxu0
        %v1155 = vadd.f32 %v1018, %v1151
        %v1156 = vadd.f32 %v1019, %v1153
        %v1157 = vperm.slane %v553, 0
        %v1158 = vadd.f32 %v1155, %v1157
        %v1159 = vadd.f32 %v1156, %v1157
        %v1160 = vadd.f32 %v551, %v1158
        %v1161 = vadd.f32 %v552, %v1159
        %v1162 = vsel %vm575, %v1160, 0.0
        %1163 = vadd.xlane.f32.xlu0 %v1162
        %v1164 = vpop.xlane.xlu0 %1163
        %v1165 = vsel %vm575, %v1161, 0.0
        %1166 = vadd.xlane.f32.xlu0 %v1165
        %v1167 = vpop.xlane.xlu0 %1166
        %v1168 = vrcp.pop 32.0
        %v1169 = vmul.f32 32.0, %v1168
        %v1170 = vsub.f32 1.0, %v1169
        %v1171 = vmul.f32 %v1168, %v1170
        %v1172 = vadd.f32 %v1168, %v1171
        %vm1173 = vweird.f32 %v1168
        %v1174 = vsel %vm1173, %v1168, %v1172
        %v1175 = vmul.f32 %v1164, %v1174
        %v1176 = vmul.f32 %v1167, %v1174
        %v1177 = vsub.f32 %v1160, %v1175
        %v1178 = vsub.f32 %v1161, %v1176
        %v1179 = vmul.f32 %v1177, %v1177
        %v1180 = vmul.f32 %v1178, %v1178
        %v1181 = vsel %vm575, %v1179, 0.0
        %1182 = vadd.xlane.f32.xlu0 %v1181
        %v1183 = vpop.xlane.xlu0 %1182
        %v1184 = vsel %vm575, %v1180, 0.0
        %1185 = vadd.xlane.f32.xlu0 %v1184
        %v1186 = vpop.xlane.xlu0 %1185
        %v1187 = vmul.f32 %v1183, %v1174
        %v1188 = vmul.f32 %v1186, %v1174
        %v1189 = vadd.f32 %v1187, 1e-05
        %v1190 = vadd.f32 %v1188, 1e-05
        %v1191 = vrsqrt.pop %v1189
        %v1192 = vmul.f32 %v1191, %v1189
        %v1193 = vmul.f32 %v1192, %v1191
        %v1194 = vmul.f32 0.5, %v1193
        %v1195 = vsub.f32 1.5, %v1194
        %v1196 = vmul.f32 %v1191, %v1195
        %vm1197 = vweird.f32 %v1189
        %vm1198 = vweird.f32 %v1191
        %vm1199 = vmor %vm1197, %vm1198
        %v1200 = vsel %vm1199, %v1191, %v1196
        %v1201 = vrsqrt.pop %v1190
        %v1202 = vmul.f32 %v1201, %v1190
        %v1203 = vmul.f32 %v1202, %v1201
        %v1204 = vmul.f32 0.5, %v1203
        %v1205 = vsub.f32 1.5, %v1204
        %v1206 = vmul.f32 %v1201, %v1205
        %vm1207 = vweird.f32 %v1190
        %vm1208 = vweird.f32 %v1201
        %vm1209 = vmor %vm1207, %vm1208
        %v1210 = vsel %vm1209, %v1201, %v1206
        %v1211 = vmul.f32 %v1177, %v1200
        %v1212 = vmul.f32 %v1178, %v1210
        %v1213 = vperm.slane %v553, 1
        %v1214 = vmul.f32 %v1211, %v1213
        %v1215 = vmul.f32 %v1212, %v1213
        %v1216 = vperm.slane %v553, 2
        %v1217 = vadd.f32 %v1214, %v1216
        %v1218 = vadd.f32 %v1215, %v1216
        %v1219 = vld [vmem:[%s465] sm:$0xf]
        %v1220 = vld [vmem:[%s465 + $0x4] sm:$0xf]
        %v1221 = vld [vmem:[%s465 + $0x8] sm:$0xf]
        %v1222 = vld [vmem:[%s465 + $0xc] sm:$0xf]
        %v1223 = vpack.c.bf16 %v1218, %v1217
        %v1224 = vld [vmem:[%s468] sm:$0x1]
        %v1226 = vperm.slane %v1224, 0
        %v1232 = vunpack.c.l.b16 %v1219
        %v1233 = vunpack.c.l.b16 %v1220
        %v1234 = vunpack.c.l.b16 %v1221
        %v1235 = vunpack.c.l.b16 %v1222
        %v1236 = vpack.c.b16 %v1233, %v1232
        %v1237 = vpack.c.b16 %v1235, %v1234
        %v1241 = vsel %vm575, %v1223, 0
        %1243 = vmatpush.bf16.msra.mxu0 0
        %1244 = vmatpush.bf16.msra.mxu0 0
        %1245 = vmatpush.bf16.msra.mxu0 0
        %1246 = vmatpush.bf16.msra.mxu0 0
        %1247 = vmatpush.bf16.msra.mxu0 0
        %1248 = vmatpush.bf16.msra.mxu0 0
        %1249 = vmatpush.bf16.msra.mxu0 %v1237
        %1250 = vmatpush.bf16.msra.mxu0 %v1236
        %1251 = vmatmul.bf16.gmra.mxu0 %v1241
        %v1252 = vpop.f32.mrf.mxu0
        %v1253 = vadd.f32 %v1226, %v1252
        %v1254 = vpop.f32.mrf.mxu0
        %v1255 = vadd.f32 %v1226, %v1254
        %1256 = vdwg.mxu0
        %v1257 = vmax.f32 %v1253, 0.0
        %v1258 = vmax.f32 %v1255, 0.0
        %v1259 = vld [vmem:[%s473] sm:$0xf]
        %v1260 = vld [vmem:[%s473 + $0x4] sm:$0xf]
        %v1261 = vld [vmem:[%s473 + $0x8] sm:$0xf]
        %v1262 = vld [vmem:[%s473 + $0xc] sm:$0xf]
        %v1263 = vld [vmem:[%s473 + $0x10] sm:$0xf]
        %v1264 = vld [vmem:[%s473 + $0x14] sm:$0xf]
        %v1265 = vld [vmem:[%s473 + $0x18] sm:$0xf]
        %v1266 = vld [vmem:[%s473 + $0x1c] sm:$0xf]
        %v1267 = vpack.c.bf16 %v1258, %v1257
        %v1268 = vperm.slane %v553, 3
        %v1277 = vunpack.c.l.b16 %v1259
        %v1278 = vunpack.c.l.b16 %v1260
        %v1279 = vunpack.c.l.b16 %v1261
        %v1280 = vunpack.c.l.b16 %v1262
        %v1281 = vunpack.c.l.b16 %v1263
        %v1282 = vunpack.c.l.b16 %v1264
        %v1283 = vunpack.c.l.b16 %v1265
        %v1284 = vunpack.c.l.b16 %v1266
        %v1285 = vpack.c.b16 %v1278, %v1277
        %v1286 = vpack.c.b16 %v1280, %v1279
        %v1287 = vpack.c.b16 %v1282, %v1281
        %v1288 = vpack.c.b16 %v1284, %v1283
        %vm1293 = vcmask 523264
        %v1295 = vsel %vm1293, %v1267, 0
        %1297 = vmatpush.bf16.msra.mxu0 0
        %1298 = vmatpush.bf16.msra.mxu0 0
        %1299 = vmatpush.bf16.msra.mxu0 0
        %1300 = vmatpush.bf16.msra.mxu0 0
        %1301 = vmatpush.bf16.msra.mxu0 %v1288
        %1302 = vmatpush.bf16.msra.mxu0 %v1287
        %1303 = vmatpush.bf16.msra.mxu0 %v1286
        %1304 = vmatpush.bf16.msra.mxu0 %v1285
        %1305 = vmatmul.bf16.gmra.mxu0 %v1295
        %v1306 = vpop.f32.mrf.mxu0
        %v1307 = vadd.f32 %v1268, %v1306
        %v1308 = vpop.f32.mrf.mxu0
        %v1309 = vadd.f32 %v1268, %v1308
        %1310 = vdwg.mxu0
        %v1311 = vadd.f32 %v1217, %v1307
        %v1312 = vadd.f32 %v1218, %v1309
        %v1313 = vsel %vm575, %v1311, 0.0
        %1314 = vadd.xlane.f32.xlu0 %v1313
        %v1315 = vpop.xlane.xlu0 %1314
        %v1316 = vsel %vm575, %v1312, 0.0
        %1317 = vadd.xlane.f32.xlu0 %v1316
        %v1318 = vpop.xlane.xlu0 %1317
        %v1319 = vmul.f32 %v1315, %v1174
        %v1320 = vmul.f32 %v1318, %v1174
        %v1321 = vsub.f32 %v1311, %v1319
        %v1322 = vsub.f32 %v1312, %v1320
        %v1323 = vmul.f32 %v1321, %v1321
        %v1324 = vmul.f32 %v1322, %v1322
        %v1325 = vsel %vm575, %v1323, 0.0
        %1326 = vadd.xlane.f32.xlu0 %v1325
        %v1327 = vpop.xlane.xlu0 %1326
        %v1328 = vsel %vm575, %v1324, 0.0
        %1329 = vadd.xlane.f32.xlu0 %v1328
        %v1330 = vpop.xlane.xlu0 %1329
        %v1331 = vmul.f32 %v1327, %v1174
        %v1332 = vmul.f32 %v1330, %v1174
        %v1333 = vadd.f32 %v1331, 1e-05
        %v1334 = vadd.f32 %v1332, 1e-05
        %v1335 = vrsqrt.pop %v1333
        %v1336 = vmul.f32 %v1335, %v1333
        %v1337 = vmul.f32 %v1336, %v1335
        %v1338 = vmul.f32 0.5, %v1337
        %v1339 = vsub.f32 1.5, %v1338
        %v1340 = vmul.f32 %v1335, %v1339
        %vm1341 = vweird.f32 %v1333
        %vm1342 = vweird.f32 %v1335
        %vm1343 = vmor %vm1341, %vm1342
        %v1344 = vsel %vm1343, %v1335, %v1340
        %v1345 = vrsqrt.pop %v1334
        %v1346 = vmul.f32 %v1345, %v1334
        %v1347 = vmul.f32 %v1346, %v1345
        %v1348 = vmul.f32 0.5, %v1347
        %v1349 = vsub.f32 1.5, %v1348
        %v1350 = vmul.f32 %v1345, %v1349
        %vm1351 = vweird.f32 %v1334
        %vm1352 = vweird.f32 %v1345
        %vm1353 = vmor %vm1351, %vm1352
        %v1354 = vsel %vm1353, %v1345, %v1350
        %v1355 = vmul.f32 %v1321, %v1344
        %v1356 = vmul.f32 %v1322, %v1354
        %v1357 = vperm.slane %v553, 4
        %v1358 = vmul.f32 %v1355, %v1357
        %v1359 = vmul.f32 %v1356, %v1357
        %v1360 = vperm.slane %v553, 5
        %v1361 = vadd.f32 %v1358, %v1360
        %v1362 = vadd.f32 %v1359, %v1360
        %1363 = vst.msk [vmem:[#allocation2] sm:$0xff] %vm575, %v1361
        %1364 = vst.msk [vmem:[#allocation2 + $0x8] sm:$0xff] %vm575, %v1362
        // Predicated region
        $region69: #{tpu_custom_call.1} parent=63 // pred_check
          %p1365 = pneg %p302
        $region70: #{tpu_custom_call.1} parent=63 // pred_check_branch
          %1367 = sbr.rel (%p1365) target = $region72
        $region71: #{tpu_custom_call.1} parent=63 // pred_region
          %1369 = vsyncadd [#allocation3], 0
          %s1370 = sshll.u32 [#allocation2], 4
          %s1371 = int_to_ptr.vmem [resolvable:$true] %s1370
          %s1372 = sshll.u32 %s11, 4
          %s1373 = int_to_ptr.hbm [resolvable:$true] %s1372
          %1378 = dma.vmem_to_hbm [thread:$0]  %s1371, 256, %s1373, [#allocation3], 128, 128, 8
        $region72: #{tpu_custom_call.1} parent=63 // pred_fallthru
          _
        // Predicated region
        $region73: #{tpu_custom_call.1} parent=63 // pred_check
          %p1379 = pneg %p302
        $region74: #{tpu_custom_call.1} parent=63 // pred_check_branch
          %1381 = sbr.rel (%p1379) target = $region76
        $region75: #{tpu_custom_call.1} parent=63 // pred_region
          %1383 = dma.done [#allocation3], 256
        $region76: #{tpu_custom_call.1} parent=63 // pred_fallthru
          _
      $region64: #{tpu_custom_call.1} parent=5 // pred_fallthru
        _
      %p1384 = scmp.le.s32.totalorder 2, %s18
      // Predicated region
      $region77: #{tpu_custom_call.1} parent=5 // pred_check
        %p1385 = pneg %p1384
      $region78: #{tpu_custom_call.1} parent=5 // pred_check_branch
        %1387 = sbr.rel (%p1385) target = $region80
      $region79: #{tpu_custom_call.1} parent=5 // pred_region
        %s1388 = ssub.s32 %s18, 2
      $region80: #{tpu_custom_call.1} parent=5 // pred_fallthru
        _
    $region6: #{tpu_custom_call.1} parent=1 // loop_footer
      %s22 = sadd.s32 1, %s18
    $region7: #{tpu_custom_call.1} parent=1 // loop_footer_branch
      %17 = sbr.rel target = $region3
    $region8: #{tpu_custom_call.1} parent=1 // loop_exit
      _
    %1389 = vsyncpa [#allocation3], 1
    %s1390 = scalar_lea.sflag [#allocation3], 1
    %1391 = vsyncpa %s1390, 1

</llo_original>
